<compile_context>
chip_gen: v6e
topology: v6e:2x2x1
jax: 0.10.0
libtpu: 0.0.40
codegen_flags: <defaults>
</compile_context>

<pallas_src>
import functools

import jax
import jax.numpy as jnp
from jax.experimental import pallas as pl
from jax.experimental.pallas import tpu as pltpu


def _attention_block_kernel(x_ref, wqkv_ref, bqkv_ref, wo_ref, bo_ref,
                            o_ref, attn_ref, *, num_heads):
    Bb, S, E = x_ref.shape
    H = num_heads
    hd = E // H

    # Full-width packed QKV projection: (Bb*S, E) x (E, 3E).
    x2 = x_ref[...].reshape(Bb * S, E)                 # leading-dim merge (free)
    qkv = jnp.dot(x2, wqkv_ref[...],
                  preferred_element_type=jnp.float32) + bqkv_ref[...]

    # Hoisted 2D causal mask (position i attends to j <= i), built once per block.
    row = jax.lax.broadcasted_iota(jnp.int32, (S, S), 0)
    col = jax.lax.broadcasted_iota(jnp.int32, (S, S), 1)
    causal = (col <= row)[None]                        # (1, S, S), broadcast over batch

    neg_big = jnp.float32(-1e30)

    # Only the attention einsums iterate over heads (H is small, unrolled).
    for h in range(H):
        q_h = qkv[:, h * hd:(h + 1) * hd].reshape(Bb, S, hd)          # scale pre-folded
        k_h = qkv[:, E + h * hd:E + (h + 1) * hd].reshape(Bb, S, hd)
        v_h = qkv[:, 2 * E + h * hd:2 * E + (h + 1) * hd].reshape(Bb, S, hd)

        # Batched scores over the batch block; contraction on last dims (no k.T).
        s = jnp.einsum('bqd,bkd->bqk', q_h, k_h,
                       preferred_element_type=jnp.float32)
        s = jnp.where(causal, s, neg_big)

        m = jnp.max(s, axis=-1, keepdims=True)
        p = jnp.exp(s - m)
        denom = jnp.sum(p, axis=-1, keepdims=True)
        inv = pl.reciprocal(denom, approx=True)        # EUP slot
        inv = inv * (2.0 - denom * inv)                # one Newton step -> f32-accurate
        p = p * inv

        a_h = jnp.einsum('bqk,bkd->bqd', p, v_h,
                         preferred_element_type=jnp.float32)
        # Concat heads along the feature axis via the VMEM scratch buffer.
        attn_ref[:, h * hd:(h + 1) * hd] = a_h.reshape(Bb * S, hd)

    # Single full-width output projection: (Bb*S, E) x (E, E).
    out = jnp.dot(attn_ref[...], wo_ref[...],
                  preferred_element_type=jnp.float32) + bo_ref[...]
    o_ref[...] = out.reshape(Bb, S, E).astype(o_ref.dtype)


def _pick_batch_block(B, S, target_rows=512):
    """Largest divisor of B with Bb*S <= target_rows, keeping >=2 grid steps
    (so the parallel axis can be sharded across v7x's two TensorCores)."""
    best = 1
    for d in range(1, B + 1):
        if B % d != 0:
            continue
        if d * S > max(target_rows, S):
            continue
        if B >= 2 and B // d < 2:
            continue
        best = d
    return best


def attention_block(x, params, num_heads):
    """x: (B, S, E) float32.  Returns attn_output: (B, S, E)."""
    B, S, E = x.shape
    wq, wk, wv, bq, bk, bv, wo, bo = params
    assert wq.shape == (E, E) and wo.shape == (E, E)
    assert wk.shape == (E, E) and wv.shape == (E, E), \
        "kernel assumes kdim == vdim == embed_dim (forward() feeds x as k/v)"
    assert E % num_heads == 0
    H = num_heads
    hd = E // H
    scale = jnp.float32(1.0 / (hd ** 0.5))

    # --- wrapper-side (free) layout plumbing: transpose + pack QKV + scale fold ---
    wqkvT = jnp.concatenate([wq.T * scale, wk.T, wv.T], axis=-1)   # (E, 3E)
    bqkv = jnp.concatenate([bq * scale, bk, bv], axis=-1)          # (1, 3E)
    woT = wo.T                                                     # (E, E)

    Bb = _pick_batch_block(B, S)
    grid = (B // Bb,)                    # batch blocks only; heads handled in-kernel

    kernel = functools.partial(_attention_block_kernel, num_heads=H)

    return pl.pallas_call(
        kernel,
        out_shape=jax.ShapeDtypeStruct((B, S, E), x.dtype),
        grid_spec=pltpu.PrefetchScalarGridSpec(
            num_scalar_prefetch=0,
            grid=grid,
            in_specs=[
                pl.BlockSpec((Bb, S, E), lambda b: (b, 0, 0)),      # x block
                pl.BlockSpec((E, 3 * E), lambda b: (0, 0)),         # packed W_qkv^T (resident)
                pl.BlockSpec((1, 3 * E), lambda b: (0, 0)),         # packed b_qkv  (resident)
                pl.BlockSpec((E, E), lambda b: (0, 0)),             # W_o^T         (resident)
                pl.BlockSpec((1, E), lambda b: (0, 0)),             # b_o           (resident)
            ],
            out_specs=pl.BlockSpec((Bb, S, E), lambda b: (b, 0, 0)),
            scratch_shapes=[pltpu.VMEM((Bb * S, E), jnp.float32)],  # head-concat buffer
        ),
        compiler_params=pltpu.CompilerParams(
            dimension_semantics=("parallel",),
            vmem_limit_bytes=48 * 1024 * 1024),
    )(x, wqkvT, bqkv, woT, bo)


def attention_block_reference(x, params, num_heads):
    """Pure-JAX reference mirroring torch.nn.MultiheadAttention semantics."""
    wq, wk, wv, bq, bk, bv, wo, bo = params
    B, S, E = x.shape
    hd = E // num_heads
    scale = 1.0 / (hd ** 0.5)

    q = x @ wq.T + bq[0]
    k = x @ wk.T + bk[0]
    v = x @ wv.T + bv[0]
    q = q.reshape(B, S, num_heads, hd).transpose(0, 2, 1, 3)
    k = k.reshape(B, S, num_heads, hd).transpose(0, 2, 1, 3)
    v = v.reshape(B, S, num_heads, hd).transpose(0, 2, 1, 3)

    scores = jnp.einsum('bhqd,bhkd->bhqk', q, k) * scale
    causal = jnp.tril(jnp.ones((S, S), dtype=bool))
    scores = jnp.where(causal[None, None], scores, jnp.float32(-1e30))
    p = jax.nn.softmax(scores, axis=-1)
    attn = jnp.einsum('bhqk,bhkd->bhqd', p, v)
    attn = attn.transpose(0, 2, 1, 3).reshape(B, S, E)
    return attn @ wo.T + bo[0]


def init_params(key, in_channels, key_size, value_size):
    """Deterministic synthetic parameters (shapes follow nn.MultiheadAttention)."""
    E = in_channels
    ks = jax.random.split(key, 8)
    s = 0.1
    wq = jax.random.normal(ks[0], (E, E), jnp.float32) * s
    wk = jax.random.normal(ks[1], (E, key_size), jnp.float32) * s
    wv = jax.random.normal(ks[2], (E, value_size), jnp.float32) * s
    bq = jax.random.normal(ks[3], (1, E), jnp.float32) * s
    bk = jax.random.normal(ks[4], (1, E), jnp.float32) * s
    bv = jax.random.normal(ks[5], (1, E), jnp.float32) * s
    wo = jax.random.normal(ks[6], (E, E), jnp.float32) * s
    bo = jax.random.normal(ks[7], (1, E), jnp.float32) * s
    return (wq, wk, wv, bq, bk, bv, wo, bo)


if __name__ == "__main__":
    # Small shapes consistent with the module's forward (x: (B, seq_length, in_channels)).
    B = 2
    seq_length = 8
    in_channels = 32
    num_heads = 4
    key_size = in_channels     # forward() passes x as key/value => kdim == vdim == E
    value_size = in_channels

    root = jax.random.PRNGKey(0)
    kx, kp = jax.random.split(root)
    x = jax.random.normal(kx, (B, seq_length, in_channels), jnp.float32)
    params = init_params(kp, in_channels, key_size, value_size)

    out = attention_block(x, params, num_heads)
    out = jax.block_until_ready(out)

    ref = attention_block_reference(x, params, num_heads)
    assert out.shape == (B, seq_length, in_channels)
    assert jnp.allclose(out, ref, atol=5e-4, rtol=5e-4), "mismatch vs reference"

    print("KERNEL_OK")
</pallas_src>

<mosaic_0001>
module attributes {stable_mosaic.version = 11 : i64} {
  func.func @_attention_block_kernel(%arg0: i32, %arg1: memref<1x8x32xf32, #tpu.memory_space<vmem>>, %arg2: memref<32x96xf32, #tpu.memory_space<vmem>>, %arg3: memref<1x96xf32, #tpu.memory_space<vmem>>, %arg4: memref<32x32xf32, #tpu.memory_space<vmem>>, %arg5: memref<1x32xf32, #tpu.memory_space<vmem>>, %arg6: memref<1x8x32xf32, #tpu.memory_space<vmem>>, %arg7: memref<8x32xf32, #tpu.memory_space<vmem>>) attributes {dimension_semantics = [#tpu.dimension_semantics<parallel>], iteration_bounds = array<i64: 2>, scalar_prefetch = 0 : i64, scratch_operands = 1 : i64, tpu.core_type = #tpu.core_type<tc>, window_params = [{transform_indices = @transform_0, window_bounds = array<i64: 1, 8, 32>}, {pipeline_mode = #tpu.pipeline_mode<synchronous>, transform_indices = @transform_1, window_bounds = array<i64: 32, 96>}, {pipeline_mode = #tpu.pipeline_mode<synchronous>, transform_indices = @transform_2, window_bounds = array<i64: 1, 96>}, {pipeline_mode = #tpu.pipeline_mode<synchronous>, transform_indices = @transform_3, window_bounds = array<i64: 32, 32>}, {pipeline_mode = #tpu.pipeline_mode<synchronous>, transform_indices = @transform_4, window_bounds = array<i64: 1, 32>}, {transform_indices = @transform_5, window_bounds = array<i64: 1, 8, 32>}]} {
    %c0 = arith.constant 0 : index
    %c0_0 = arith.constant 0 : index
    %c0_1 = arith.constant 0 : index
    %0 = vector.load %arg1[%c0, %c0_0, %c0_1] : memref<1x8x32xf32, #tpu.memory_space<vmem>>, vector<1x8x32xf32>
    %1 = vector.shape_cast %0 : vector<1x8x32xf32> to vector<8x32xf32>
    %c0_2 = arith.constant 0 : index
    %c0_3 = arith.constant 0 : index
    %2 = vector.load %arg2[%c0_2, %c0_3] : memref<32x96xf32, #tpu.memory_space<vmem>>, vector<32x96xf32>
    %cst = arith.constant dense<0.000000e+00> : vector<8x96xf32>
    %3 = tpu.matmul %1, %2, %cst {dimension_numbers = #tpu.dot_dimension_numbers<[1], [0], [0], [1], [0, 0, 1, 1], [], []>} : vector<8x32xf32>, vector<32x96xf32>, vector<8x96xf32> -> vector<8x96xf32>
    %c0_4 = arith.constant 0 : index
    %c0_5 = arith.constant 0 : index
    %4 = vector.load %arg3[%c0_4, %c0_5] : memref<1x96xf32, #tpu.memory_space<vmem>>, vector<1x96xf32>
    %5 = vector.broadcast %4 : vector<1x96xf32> to vector<8x96xf32>
    %6 = arith.addf %3, %5 : vector<8x96xf32>
    %7 = tpu.iota {dimensions = array<i32: 0>} : vector<8x8xi32>
    %8 = tpu.iota {dimensions = array<i32: 1>} : vector<8x8xi32>
    %9 = arith.cmpi sle, %8, %7 : vector<8x8xi32>
    %10 = vector.shape_cast %9 : vector<8x8xi1> to vector<1x8x8xi1>
    %11 = vector.extract_strided_slice %6 {offsets = [0, 0], sizes = [8, 8], strides = [1, 1]} : vector<8x96xf32> to vector<8x8xf32>
    %12 = vector.shape_cast %11 : vector<8x8xf32> to vector<1x8x8xf32>
    %13 = vector.extract_strided_slice %6 {offsets = [0, 32], sizes = [8, 8], strides = [1, 1]} : vector<8x96xf32> to vector<8x8xf32>
    %14 = vector.shape_cast %13 : vector<8x8xf32> to vector<1x8x8xf32>
    %15 = vector.extract_strided_slice %6 {offsets = [0, 64], sizes = [8, 8], strides = [1, 1]} : vector<8x96xf32> to vector<8x8xf32>
    %16 = vector.shape_cast %15 : vector<8x8xf32> to vector<1x8x8xf32>
    "tpu.trace_start"() <{level = 10 : i32, message = "bqd,bkd->bqk"}> : () -> ()
    %cst_6 = arith.constant dense<0.000000e+00> : vector<1x8x8xf32>
    %17 = tpu.matmul %12, %14, %cst_6 {dimension_numbers = #tpu.dot_dimension_numbers<[2], [2], [1], [1], [0, 0, 0, 1, 1, 1], [0], [0]>} : vector<1x8x8xf32>, vector<1x8x8xf32>, vector<1x8x8xf32> -> vector<1x8x8xf32>
    %cst_7 = arith.constant -1.000000e+30 : f32
    "tpu.trace_stop"() : () -> ()
    %18 = vector.broadcast %cst_7 : f32 to vector<1x8x8xf32>
    %19 = arith.select %10, %17, %18 : vector<1x8x8xi1>, vector<1x8x8xf32>
    %cst_8 = arith.constant dense<0xFF800000> : vector<1x8xf32>
    %20 = vector.multi_reduction <maximumf>, %19, %cst_8 [2] : vector<1x8x8xf32> to vector<1x8xf32>
    %21 = vector.shape_cast %20 : vector<1x8xf32> to vector<1x8x1xf32>
    %22 = vector.broadcast %21 : vector<1x8x1xf32> to vector<1x8x8xf32>
    %23 = arith.subf %19, %22 : vector<1x8x8xf32>
    %24 = math.exp %23 : vector<1x8x8xf32>
    %cst_9 = arith.constant dense<0.000000e+00> : vector<1x8xf32>
    %25 = vector.multi_reduction <add>, %24, %cst_9 [2] : vector<1x8x8xf32> to vector<1x8xf32>
    %26 = vector.shape_cast %25 : vector<1x8xf32> to vector<1x8x1xf32>
    %27 = tpu.reciprocal %26 {approx = true} : vector<1x8x1xf32> -> vector<1x8x1xf32>
    %28 = arith.mulf %26, %27 : vector<1x8x1xf32>
    %cst_10 = arith.constant 2.000000e+00 : f32
    %29 = vector.broadcast %cst_10 : f32 to vector<1x8x1xf32>
    %30 = arith.subf %29, %28 : vector<1x8x1xf32>
    %31 = arith.mulf %27, %30 : vector<1x8x1xf32>
    %32 = vector.broadcast %31 : vector<1x8x1xf32> to vector<1x8x8xf32>
    %33 = arith.mulf %24, %32 : vector<1x8x8xf32>
    "tpu.trace_start"() <{level = 10 : i32, message = "bqk,bkd->bqd"}> : () -> ()
    %cst_11 = arith.constant dense<0.000000e+00> : vector<1x8x8xf32>
    %34 = tpu.matmul %33, %16, %cst_11 {dimension_numbers = #tpu.dot_dimension_numbers<[2], [1], [1], [2], [0, 0, 0, 1, 1, 2], [0], [0]>} : vector<1x8x8xf32>, vector<1x8x8xf32>, vector<1x8x8xf32> -> vector<1x8x8xf32>
    "tpu.trace_stop"() : () -> ()
    %35 = vector.shape_cast %34 : vector<1x8x8xf32> to vector<8x8xf32>
    %c0_12 = arith.constant 0 : index
    %c0_13 = arith.constant 0 : index
    %36 = vector.load %arg7[%c0_12, %c0_13] : memref<8x32xf32, #tpu.memory_space<vmem>>, vector<8x8xf32>
    tpu.vector_store %arg7[%c0_12, %c0_13], %35 {strides = array<i32>} : memref<8x32xf32, #tpu.memory_space<vmem>>, vector<8x8xf32>,
    %37 = vector.extract_strided_slice %6 {offsets = [0, 8], sizes = [8, 8], strides = [1, 1]} : vector<8x96xf32> to vector<8x8xf32>
    %38 = vector.shape_cast %37 : vector<8x8xf32> to vector<1x8x8xf32>
    %39 = vector.extract_strided_slice %6 {offsets = [0, 40], sizes = [8, 8], strides = [1, 1]} : vector<8x96xf32> to vector<8x8xf32>
    %40 = vector.shape_cast %39 : vector<8x8xf32> to vector<1x8x8xf32>
    %41 = vector.extract_strided_slice %6 {offsets = [0, 72], sizes = [8, 8], strides = [1, 1]} : vector<8x96xf32> to vector<8x8xf32>
    %42 = vector.shape_cast %41 : vector<8x8xf32> to vector<1x8x8xf32>
    "tpu.trace_start"() <{level = 10 : i32, message = "bqd,bkd->bqk"}> : () -> ()
    %cst_14 = arith.constant dense<0.000000e+00> : vector<1x8x8xf32>
    %43 = tpu.matmul %38, %40, %cst_14 {dimension_numbers = #tpu.dot_dimension_numbers<[2], [2], [1], [1], [0, 0, 0, 1, 1, 1], [0], [0]>} : vector<1x8x8xf32>, vector<1x8x8xf32>, vector<1x8x8xf32> -> vector<1x8x8xf32>
    %cst_15 = arith.constant -1.000000e+30 : f32
    "tpu.trace_stop"() : () -> ()
    %44 = vector.broadcast %cst_15 : f32 to vector<1x8x8xf32>
    %45 = arith.select %10, %43, %44 : vector<1x8x8xi1>, vector<1x8x8xf32>
    %cst_16 = arith.constant dense<0xFF800000> : vector<1x8xf32>
    %46 = vector.multi_reduction <maximumf>, %45, %cst_16 [2] : vector<1x8x8xf32> to vector<1x8xf32>
    %47 = vector.shape_cast %46 : vector<1x8xf32> to vector<1x8x1xf32>
    %48 = vector.broadcast %47 : vector<1x8x1xf32> to vector<1x8x8xf32>
    %49 = arith.subf %45, %48 : vector<1x8x8xf32>
    %50 = math.exp %49 : vector<1x8x8xf32>
    %cst_17 = arith.constant dense<0.000000e+00> : vector<1x8xf32>
    %51 = vector.multi_reduction <add>, %50, %cst_17 [2] : vector<1x8x8xf32> to vector<1x8xf32>
    %52 = vector.shape_cast %51 : vector<1x8xf32> to vector<1x8x1xf32>
    %53 = tpu.reciprocal %52 {approx = true} : vector<1x8x1xf32> -> vector<1x8x1xf32>
    %54 = arith.mulf %52, %53 : vector<1x8x1xf32>
    %cst_18 = arith.constant 2.000000e+00 : f32
    %55 = vector.broadcast %cst_18 : f32 to vector<1x8x1xf32>
    %56 = arith.subf %55, %54 : vector<1x8x1xf32>
    %57 = arith.mulf %53, %56 : vector<1x8x1xf32>
    %58 = vector.broadcast %57 : vector<1x8x1xf32> to vector<1x8x8xf32>
    %59 = arith.mulf %50, %58 : vector<1x8x8xf32>
    "tpu.trace_start"() <{level = 10 : i32, message = "bqk,bkd->bqd"}> : () -> ()
    %cst_19 = arith.constant dense<0.000000e+00> : vector<1x8x8xf32>
    %60 = tpu.matmul %59, %42, %cst_19 {dimension_numbers = #tpu.dot_dimension_numbers<[2], [1], [1], [2], [0, 0, 0, 1, 1, 2], [0], [0]>} : vector<1x8x8xf32>, vector<1x8x8xf32>, vector<1x8x8xf32> -> vector<1x8x8xf32>
    "tpu.trace_stop"() : () -> ()
    %61 = vector.shape_cast %60 : vector<1x8x8xf32> to vector<8x8xf32>
    %c0_20 = arith.constant 0 : index
    %c8 = arith.constant 8 : index
    %62 = vector.load %arg7[%c0_20, %c8] : memref<8x32xf32, #tpu.memory_space<vmem>>, vector<8x8xf32>
    tpu.vector_store %arg7[%c0_20, %c8], %61 {strides = array<i32>} : memref<8x32xf32, #tpu.memory_space<vmem>>, vector<8x8xf32>,
    %63 = vector.extract_strided_slice %6 {offsets = [0, 16], sizes = [8, 8], strides = [1, 1]} : vector<8x96xf32> to vector<8x8xf32>
    %64 = vector.shape_cast %63 : vector<8x8xf32> to vector<1x8x8xf32>
    %65 = vector.extract_strided_slice %6 {offsets = [0, 48], sizes = [8, 8], strides = [1, 1]} : vector<8x96xf32> to vector<8x8xf32>
    %66 = vector.shape_cast %65 : vector<8x8xf32> to vector<1x8x8xf32>
    %67 = vector.extract_strided_slice %6 {offsets = [0, 80], sizes = [8, 8], strides = [1, 1]} : vector<8x96xf32> to vector<8x8xf32>
    %68 = vector.shape_cast %67 : vector<8x8xf32> to vector<1x8x8xf32>
    "tpu.trace_start"() <{level = 10 : i32, message = "bqd,bkd->bqk"}> : () -> ()
    %cst_21 = arith.constant dense<0.000000e+00> : vector<1x8x8xf32>
    %69 = tpu.matmul %64, %66, %cst_21 {dimension_numbers = #tpu.dot_dimension_numbers<[2], [2], [1], [1], [0, 0, 0, 1, 1, 1], [0], [0]>} : vector<1x8x8xf32>, vector<1x8x8xf32>, vector<1x8x8xf32> -> vector<1x8x8xf32>
    %cst_22 = arith.constant -1.000000e+30 : f32
    "tpu.trace_stop"() : () -> ()
    %70 = vector.broadcast %cst_22 : f32 to vector<1x8x8xf32>
    %71 = arith.select %10, %69, %70 : vector<1x8x8xi1>, vector<1x8x8xf32>
    %cst_23 = arith.constant dense<0xFF800000> : vector<1x8xf32>
    %72 = vector.multi_reduction <maximumf>, %71, %cst_23 [2] : vector<1x8x8xf32> to vector<1x8xf32>
    %73 = vector.shape_cast %72 : vector<1x8xf32> to vector<1x8x1xf32>
    %74 = vector.broadcast %73 : vector<1x8x1xf32> to vector<1x8x8xf32>
    %75 = arith.subf %71, %74 : vector<1x8x8xf32>
    %76 = math.exp %75 : vector<1x8x8xf32>
    %cst_24 = arith.constant dense<0.000000e+00> : vector<1x8xf32>
    %77 = vector.multi_reduction <add>, %76, %cst_24 [2] : vector<1x8x8xf32> to vector<1x8xf32>
    %78 = vector.shape_cast %77 : vector<1x8xf32> to vector<1x8x1xf32>
    %79 = tpu.reciprocal %78 {approx = true} : vector<1x8x1xf32> -> vector<1x8x1xf32>
    %80 = arith.mulf %78, %79 : vector<1x8x1xf32>
    %cst_25 = arith.constant 2.000000e+00 : f32
    %81 = vector.broadcast %cst_25 : f32 to vector<1x8x1xf32>
    %82 = arith.subf %81, %80 : vector<1x8x1xf32>
    %83 = arith.mulf %79, %82 : vector<1x8x1xf32>
    %84 = vector.broadcast %83 : vector<1x8x1xf32> to vector<1x8x8xf32>
    %85 = arith.mulf %76, %84 : vector<1x8x8xf32>
    "tpu.trace_start"() <{level = 10 : i32, message = "bqk,bkd->bqd"}> : () -> ()
    %cst_26 = arith.constant dense<0.000000e+00> : vector<1x8x8xf32>
    %86 = tpu.matmul %85, %68, %cst_26 {dimension_numbers = #tpu.dot_dimension_numbers<[2], [1], [1], [2], [0, 0, 0, 1, 1, 2], [0], [0]>} : vector<1x8x8xf32>, vector<1x8x8xf32>, vector<1x8x8xf32> -> vector<1x8x8xf32>
    "tpu.trace_stop"() : () -> ()
    %87 = vector.shape_cast %86 : vector<1x8x8xf32> to vector<8x8xf32>
    %c0_27 = arith.constant 0 : index
    %c16 = arith.constant 16 : index
    %88 = vector.load %arg7[%c0_27, %c16] : memref<8x32xf32, #tpu.memory_space<vmem>>, vector<8x8xf32>
    tpu.vector_store %arg7[%c0_27, %c16], %87 {strides = array<i32>} : memref<8x32xf32, #tpu.memory_space<vmem>>, vector<8x8xf32>,
    %89 = vector.extract_strided_slice %6 {offsets = [0, 24], sizes = [8, 8], strides = [1, 1]} : vector<8x96xf32> to vector<8x8xf32>
    %90 = vector.shape_cast %89 : vector<8x8xf32> to vector<1x8x8xf32>
    %91 = vector.extract_strided_slice %6 {offsets = [0, 56], sizes = [8, 8], strides = [1, 1]} : vector<8x96xf32> to vector<8x8xf32>
    %92 = vector.shape_cast %91 : vector<8x8xf32> to vector<1x8x8xf32>
    %93 = vector.extract_strided_slice %6 {offsets = [0, 88], sizes = [8, 8], strides = [1, 1]} : vector<8x96xf32> to vector<8x8xf32>
    %94 = vector.shape_cast %93 : vector<8x8xf32> to vector<1x8x8xf32>
    "tpu.trace_start"() <{level = 10 : i32, message = "bqd,bkd->bqk"}> : () -> ()
    %cst_28 = arith.constant dense<0.000000e+00> : vector<1x8x8xf32>
    %95 = tpu.matmul %90, %92, %cst_28 {dimension_numbers = #tpu.dot_dimension_numbers<[2], [2], [1], [1], [0, 0, 0, 1, 1, 1], [0], [0]>} : vector<1x8x8xf32>, vector<1x8x8xf32>, vector<1x8x8xf32> -> vector<1x8x8xf32>
    %cst_29 = arith.constant -1.000000e+30 : f32
    "tpu.trace_stop"() : () -> ()
    %96 = vector.broadcast %cst_29 : f32 to vector<1x8x8xf32>
    %97 = arith.select %10, %95, %96 : vector<1x8x8xi1>, vector<1x8x8xf32>
    %cst_30 = arith.constant dense<0xFF800000> : vector<1x8xf32>
    %98 = vector.multi_reduction <maximumf>, %97, %cst_30 [2] : vector<1x8x8xf32> to vector<1x8xf32>
    %99 = vector.shape_cast %98 : vector<1x8xf32> to vector<1x8x1xf32>
    %100 = vector.broadcast %99 : vector<1x8x1xf32> to vector<1x8x8xf32>
    %101 = arith.subf %97, %100 : vector<1x8x8xf32>
    %102 = math.exp %101 : vector<1x8x8xf32>
    %cst_31 = arith.constant dense<0.000000e+00> : vector<1x8xf32>
    %103 = vector.multi_reduction <add>, %102, %cst_31 [2] : vector<1x8x8xf32> to vector<1x8xf32>
    %104 = vector.shape_cast %103 : vector<1x8xf32> to vector<1x8x1xf32>
    %105 = tpu.reciprocal %104 {approx = true} : vector<1x8x1xf32> -> vector<1x8x1xf32>
    %106 = arith.mulf %104, %105 : vector<1x8x1xf32>
    %cst_32 = arith.constant 2.000000e+00 : f32
    %107 = vector.broadcast %cst_32 : f32 to vector<1x8x1xf32>
    %108 = arith.subf %107, %106 : vector<1x8x1xf32>
    %109 = arith.mulf %105, %108 : vector<1x8x1xf32>
    %110 = vector.broadcast %109 : vector<1x8x1xf32> to vector<1x8x8xf32>
    %111 = arith.mulf %102, %110 : vector<1x8x8xf32>
    "tpu.trace_start"() <{level = 10 : i32, message = "bqk,bkd->bqd"}> : () -> ()
    %cst_33 = arith.constant dense<0.000000e+00> : vector<1x8x8xf32>
    %112 = tpu.matmul %111, %94, %cst_33 {dimension_numbers = #tpu.dot_dimension_numbers<[2], [1], [1], [2], [0, 0, 0, 1, 1, 2], [0], [0]>} : vector<1x8x8xf32>, vector<1x8x8xf32>, vector<1x8x8xf32> -> vector<1x8x8xf32>
    "tpu.trace_stop"() : () -> ()
    %113 = vector.shape_cast %112 : vector<1x8x8xf32> to vector<8x8xf32>
    %c0_34 = arith.constant 0 : index
    %c24 = arith.constant 24 : index
    %114 = vector.load %arg7[%c0_34, %c24] : memref<8x32xf32, #tpu.memory_space<vmem>>, vector<8x8xf32>
    tpu.vector_store %arg7[%c0_34, %c24], %113 {strides = array<i32>} : memref<8x32xf32, #tpu.memory_space<vmem>>, vector<8x8xf32>,
    %c0_35 = arith.constant 0 : index
    %c0_36 = arith.constant 0 : index
    %115 = vector.load %arg7[%c0_35, %c0_36] : memref<8x32xf32, #tpu.memory_space<vmem>>, vector<8x32xf32>
    %c0_37 = arith.constant 0 : index
    %c0_38 = arith.constant 0 : index
    %116 = vector.load %arg4[%c0_37, %c0_38] : memref<32x32xf32, #tpu.memory_space<vmem>>, vector<32x32xf32>
    %cst_39 = arith.constant dense<0.000000e+00> : vector<8x32xf32>
    %117 = tpu.matmul %115, %116, %cst_39 {dimension_numbers = #tpu.dot_dimension_numbers<[1], [0], [0], [1], [0, 0, 1, 1], [], []>} : vector<8x32xf32>, vector<32x32xf32>, vector<8x32xf32> -> vector<8x32xf32>
    %c0_40 = arith.constant 0 : index
    %c0_41 = arith.constant 0 : index
    %118 = vector.load %arg5[%c0_40, %c0_41] : memref<1x32xf32, #tpu.memory_space<vmem>>, vector<1x32xf32>
    %119 = vector.broadcast %118 : vector<1x32xf32> to vector<8x32xf32>
    %120 = arith.addf %117, %119 : vector<8x32xf32>
    %121 = vector.shape_cast %120 : vector<8x32xf32> to vector<1x8x32xf32>
    %c0_42 = arith.constant 0 : index
    %c0_43 = arith.constant 0 : index
    %c0_44 = arith.constant 0 : index
    %122 = vector.load %arg6[%c0_42, %c0_43, %c0_44] : memref<1x8x32xf32, #tpu.memory_space<vmem>>, vector<1x8x32xf32>
    tpu.vector_store %arg6[%c0_42, %c0_43, %c0_44], %121 {strides = array<i32>} : memref<1x8x32xf32, #tpu.memory_space<vmem>>, vector<1x8x32xf32>,
    return
  }
  func.func @transform_0(%arg0: i32) -> (i32, i32, i32) {
    %c0_i32 = arith.constant 0 : i32
    %c0_i32_0 = arith.constant 0 : i32
    %c0_i32_1 = arith.constant 0 : i32
    return %arg0, %c0_i32, %c0_i32_0 : i32, i32, i32
  }
  func.func @transform_1(%arg0: i32) -> (i32, i32) {
    %c0_i32 = arith.constant 0 : i32
    %c0_i32_0 = arith.constant 0 : i32
    %c0_i32_1 = arith.constant 0 : i32
    return %c0_i32, %c0_i32_0 : i32, i32
  }
  func.func @transform_2(%arg0: i32) -> (i32, i32) {
    %c0_i32 = arith.constant 0 : i32
    %c0_i32_0 = arith.constant 0 : i32
    %c0_i32_1 = arith.constant 0 : i32
    return %c0_i32, %c0_i32_0 : i32, i32
  }
  func.func @transform_3(%arg0: i32) -> (i32, i32) {
    %c0_i32 = arith.constant 0 : i32
    %c0_i32_0 = arith.constant 0 : i32
    %c0_i32_1 = arith.constant 0 : i32
    return %c0_i32, %c0_i32_0 : i32, i32
  }
  func.func @transform_4(%arg0: i32) -> (i32, i32) {
    %c0_i32 = arith.constant 0 : i32
    %c0_i32_0 = arith.constant 0 : i32
    %c0_i32_1 = arith.constant 0 : i32
    return %c0_i32, %c0_i32_0 : i32, i32
  }
  func.func @transform_5(%arg0: i32) -> (i32, i32, i32) {
    %c0_i32 = arith.constant 0 : i32
    %c0_i32_0 = arith.constant 0 : i32
    %c0_i32_1 = arith.constant 0 : i32
    return %arg0, %c0_i32, %c0_i32_0 : i32, i32, i32
  }
}

</mosaic_0001>

<llo_original>
// kernel: tpu_custom_call.1
$region0: #{tpu_custom_call.1}
  #allocation0 [shape = 'u32[]', space=smem, size = 0x4, offset = 0x4, fixed_abs, tag = 'smem constant byte address 0x4 - core index']
  #allocation1 [shape = 'u32[144,128]{1,0:T(1,128)}', space=vmem, size = 0x12000, scoped, tag = 'internal scratch']
  #allocation2 [shape = 'f32[8,32]{1,0:T(8,128)}', space=vmem, size = 0x1000, scoped, tag = 'scratch operand']
  %s0 = inlined_call_operand.hbm [shape: f32[2,8,32], index: 0, kind: input, shape index: {}]
  %s1 = inlined_call_operand.hbm [shape: f32[32,96], index: 1, kind: input, shape index: {}]
  %s2 = inlined_call_operand.vmem [shape: f32[1,96], index: 2, kind: input, shape index: {}]
  %s3 = inlined_call_operand.hbm [shape: f32[32,32], index: 3, kind: input, shape index: {}]
  %s4 = inlined_call_operand.vmem [shape: f32[1,32], index: 4, kind: input, shape index: {}]
  %s5 = inlined_call_operand.hbm [shape: f32[2,8,32], index: 5, kind: output, shape index: {}]
  %s6 = sld [smem:[#allocation0]]
  $region65: #{tpu_custom_call.1} parent=0
    _
  %s8 = ssub.s32 1, %s6
  %s9 = scalar_select 0, %s8, %s6
  $region1: #{tpu_custom_call.1} parent=0
    #allocation3 [shape = 'u8[8192]{0}', space=vmem, size = 0x2000, scoped, tag = 'input window, operand 0']
    #allocation4 [shape = 's32[2]{0}', space=sflag, size = 0x8, scoped, tag = 'scoped memory for tpu_custom_call.1']
    #allocation5 [shape = 's32[2]{0}', space=sflag, size = 0x8, scoped, tag = 'scoped memory for tpu_custom_call.1']
    #allocation6 [shape = 'u8[16384]{0}', space=vmem, size = 0x4000, scoped, tag = 'input window, operand 1, single buffered']
    #allocation7 [shape = 's32[1]{0}', space=sflag, size = 0x4, scoped, tag = 'scoped memory for tpu_custom_call.1']
    #allocation8 [shape = 'u8[16384]{0}', space=vmem, size = 0x4000, scoped, tag = 'input window, operand 3, single buffered']
    #allocation9 [shape = 'u8[8192]{0}', space=vmem, size = 0x2000, scoped, tag = 'output window, operand 0']
    %10 = vsyncpa [#allocation4], 0
    %s11 = scalar_lea.sflag [#allocation4], 1
    %12 = vsyncpa %s11, 0
    %13 = vsyncpa [#allocation7], 0
    %14 = vsyncpa [#allocation5], 0
    %s15 = scalar_lea.sflag [#allocation5], 1
    %16 = vsyncpa %s15, 0
    loop: start=0, step=1, limit=4
    $region2: #{tpu_custom_call.1} parent=1 // loop_pre_header
      _
    $region3: #{tpu_custom_call.1} parent=1 // loop_header
      %s18 = sphi 0, %s22
      %p19 = scmp.ge.s32.totalorder %s18, 4
      %s28 = sphi 0, %s30
      %s31 = sphi 0, %s28
      %s32 = sphi 0, %s31
      %s48 = sphi 0, %s32
      %s52 = sphi 0, %s52
      %s54 = sphi 0, %s52
      %s55 = sphi 0, %s54
      %s69 = sphi 0, %s55
      %s73 = sphi 0, %s73
      %s75 = sphi 0, %s73
      %s76 = sphi 0, %s75
      %s90 = sphi 0, %s76
      %s94 = sphi 0, %s94
      %s96 = sphi 0, %s94
      %s97 = sphi 0, %s96
      %s111 = sphi 0, %s97
      %s115 = sphi 0, %s115
      %s117 = sphi 0, %s115
      %s118 = sphi 0, %s117
      %s132 = sphi 0, %s118
      %s138 = sphi 0, %s140
      %s141 = sphi 0, %s138
      %s142 = sphi 0, %s141
      %s158 = sphi 0, %s142
    $region4: #{tpu_custom_call.1} parent=1 // loop_header_branch
      %21 = sbr.rel (%p19) target = $region8
    $region5: #{tpu_custom_call.1} parent=1 // loop_body
      %s23 = ssub.s32 %s18, 1
      %s24 = ssub.s32 %s18, 2
      %s25 = sadd.s32 %s18, 1
      %s26 = ssub.s32 %s18, %s25
      %p27 = scmp.eq.s32.totalorder %s26, 0
      %s29 = sadd.s32 %s28, 1
      %s30 = scalar_select %p27, %s28, %s29
      %p33 = pneg %p27
      %p34 = scmp.eq.s32.totalorder %s18, 1
      %p35 = por %p33, %p34
      %p36 = scmp.ne.s32.totalorder %s28, %s31
      %p37 = scmp.eq.s32.totalorder %s18, 0
      %p38 = por %p36, %p37
      %p39 = scmp.ne.s32.totalorder %s28, %s31
      %p40 = scmp.eq.s32.totalorder %s23, 1
      %p41 = por %p39, %p40
      %p42 = scmp.ne.s32.totalorder %s31, %s32
      %p43 = scmp.eq.s32.totalorder %s23, 0
      %p44 = por %p42, %p43
      %p45 = scmp.ne.s32.totalorder %s31, %s32
      %p46 = scmp.eq.s32.totalorder %s24, 1
      %p47 = por %p45, %p46
      %p49 = scmp.ne.s32.totalorder %s32, %s48
      %p50 = scmp.eq.s32.totalorder %s24, 0
      %p51 = por %p49, %p50
      %s53 = sadd.s32 %s52, 1
      %p56 = scmp.eq.s32.totalorder %s18, 1
      %p57 = scmp.ne.s32.totalorder %s52, %s54
      %p58 = scmp.eq.s32.totalorder %s18, 0
      %p59 = por %p57, %p58
      %p60 = scmp.ne.s32.totalorder %s52, %s54
      %p61 = scmp.eq.s32.totalorder %s23, 1
      %p62 = por %p60, %p61
      %p63 = scmp.ne.s32.totalorder %s54, %s55
      %p64 = scmp.eq.s32.totalorder %s23, 0
      %p65 = por %p63, %p64
      %p66 = scmp.ne.s32.totalorder %s54, %s55
      %p67 = scmp.eq.s32.totalorder %s24, 1
      %p68 = por %p66, %p67
      %p70 = scmp.ne.s32.totalorder %s55, %s69
      %p71 = scmp.eq.s32.totalorder %s24, 0
      %p72 = por %p70, %p71
      %s74 = sadd.s32 %s73, 1
      %p77 = scmp.eq.s32.totalorder %s18, 1
      %p78 = scmp.ne.s32.totalorder %s73, %s75
      %p79 = scmp.eq.s32.totalorder %s18, 0
      %p80 = por %p78, %p79
      %p81 = scmp.ne.s32.totalorder %s73, %s75
      %p82 = scmp.eq.s32.totalorder %s23, 1
      %p83 = por %p81, %p82
      %p84 = scmp.ne.s32.totalorder %s75, %s76
      %p85 = scmp.eq.s32.totalorder %s23, 0
      %p86 = por %p84, %p85
      %p87 = scmp.ne.s32.totalorder %s75, %s76
      %p88 = scmp.eq.s32.totalorder %s24, 1
      %p89 = por %p87, %p88
      %p91 = scmp.ne.s32.totalorder %s76, %s90
      %p92 = scmp.eq.s32.totalorder %s24, 0
      %p93 = por %p91, %p92
      %s95 = sadd.s32 %s94, 1
      %p98 = scmp.eq.s32.totalorder %s18, 1
      %p99 = scmp.ne.s32.totalorder %s94, %s96
      %p100 = scmp.eq.s32.totalorder %s18, 0
      %p101 = por %p99, %p100
      %p102 = scmp.ne.s32.totalorder %s94, %s96
      %p103 = scmp.eq.s32.totalorder %s23, 1
      %p104 = por %p102, %p103
      %p105 = scmp.ne.s32.totalorder %s96, %s97
      %p106 = scmp.eq.s32.totalorder %s23, 0
      %p107 = por %p105, %p106
      %p108 = scmp.ne.s32.totalorder %s96, %s97
      %p109 = scmp.eq.s32.totalorder %s24, 1
      %p110 = por %p108, %p109
      %p112 = scmp.ne.s32.totalorder %s97, %s111
      %p113 = scmp.eq.s32.totalorder %s24, 0
      %p114 = por %p112, %p113
      %s116 = sadd.s32 %s115, 1
      %p119 = scmp.eq.s32.totalorder %s18, 1
      %p120 = scmp.ne.s32.totalorder %s115, %s117
      %p121 = scmp.eq.s32.totalorder %s18, 0
      %p122 = por %p120, %p121
      %p123 = scmp.ne.s32.totalorder %s115, %s117
      %p124 = scmp.eq.s32.totalorder %s23, 1
      %p125 = por %p123, %p124
      %p126 = scmp.ne.s32.totalorder %s117, %s118
      %p127 = scmp.eq.s32.totalorder %s23, 0
      %p128 = por %p126, %p127
      %p129 = scmp.ne.s32.totalorder %s117, %s118
      %p130 = scmp.eq.s32.totalorder %s24, 1
      %p131 = por %p129, %p130
      %p133 = scmp.ne.s32.totalorder %s118, %s132
      %p134 = scmp.eq.s32.totalorder %s24, 0
      %p135 = por %p133, %p134
      %s136 = ssub.s32 %s18, %s25
      %p137 = scmp.eq.s32.totalorder %s136, 0
      %s139 = sadd.s32 %s138, 1
      %s140 = scalar_select %p137, %s138, %s139
      %p143 = pneg %p137
      %p144 = scmp.eq.s32.totalorder %s18, 1
      %p145 = por %p143, %p144
      %p146 = scmp.ne.s32.totalorder %s138, %s141
      %p147 = scmp.eq.s32.totalorder %s18, 0
      %p148 = por %p146, %p147
      %p149 = scmp.ne.s32.totalorder %s138, %s141
      %p150 = scmp.eq.s32.totalorder %s23, 1
      %p151 = por %p149, %p150
      %p152 = scmp.ne.s32.totalorder %s141, %s142
      %p153 = scmp.eq.s32.totalorder %s23, 0
      %p154 = por %p152, %p153
      %p155 = scmp.ne.s32.totalorder %s141, %s142
      %p156 = scmp.eq.s32.totalorder %s24, 1
      %p157 = por %p155, %p156
      %p159 = scmp.ne.s32.totalorder %s142, %s158
      %p160 = scmp.eq.s32.totalorder %s24, 0
      %p161 = por %p159, %p160
      %p162 = scmp.le.s32.totalorder 1, %s18
      %p163 = scmp.lt.s32.totalorder %s18, 3
      %p164 = pnand %p162, %p163
      %p165 = pneg %p164
      // Predicated region
      $region9: #{tpu_custom_call.1} parent=5 // pred_check
        _
      $region10: #{tpu_custom_call.1} parent=5 // pred_check_branch
        %167 = sbr.rel (%p164) target = $region12
      $region11: #{tpu_custom_call.1} parent=5 // pred_region
        %s168 = ssub.s32 %s18, 1
        // Predicated region
        $region13: #{tpu_custom_call.1} parent=11 // pred_check
          %p169 = pneg %p65
        $region14: #{tpu_custom_call.1} parent=11 // pred_check_branch
          %171 = sbr.rel (%p169) target = $region16
        $region15: #{tpu_custom_call.1} parent=11 // pred_region
          %s173 = ssub.s32 512, 512
          %174 = vsyncadd [#allocation7], %s173
          %s175 = sshll.u32 [#allocation6], 4
          %s176 = int_to_ptr.vmem [resolvable:$true] %s175
          %181 = dma.hbm_to_vmem [thread:$0]  %s1, 512, %s176, [#allocation7], 128, 128, 8
        $region16: #{tpu_custom_call.1} parent=11 // pred_fallthru
          _
        // Predicated region
        $region17: #{tpu_custom_call.1} parent=11 // pred_check
          %p182 = pneg %p86
        $region18: #{tpu_custom_call.1} parent=11 // pred_check_branch
          %184 = sbr.rel (%p182) target = $region20
        $region19: #{tpu_custom_call.1} parent=11 // pred_region
          _
        $region20: #{tpu_custom_call.1} parent=11 // pred_fallthru
          _
        // Predicated region
        $region21: #{tpu_custom_call.1} parent=11 // pred_check
          %p185 = pneg %p107
        $region22: #{tpu_custom_call.1} parent=11 // pred_check_branch
          %187 = sbr.rel (%p185) target = $region24
        $region23: #{tpu_custom_call.1} parent=11 // pred_region
          %s189 = ssub.s32 512, 512
          %190 = vsyncadd [#allocation7], %s189
          %s191 = sshll.u32 [#allocation8], 4
          %s192 = int_to_ptr.vmem [resolvable:$true] %s191
          %197 = dma.hbm_to_vmem [thread:$0]  %s3, 512, %s192, [#allocation7], 128, 128, 8
        $region24: #{tpu_custom_call.1} parent=11 // pred_fallthru
          _
        // Predicated region
        $region25: #{tpu_custom_call.1} parent=11 // pred_check
          %p198 = pneg %p128
        $region26: #{tpu_custom_call.1} parent=11 // pred_check_branch
          %200 = sbr.rel (%p198) target = $region28
        $region27: #{tpu_custom_call.1} parent=11 // pred_region
          _
        $region28: #{tpu_custom_call.1} parent=11 // pred_fallthru
          _
      $region12: #{tpu_custom_call.1} parent=5 // pred_fallthru
        _
      %p201 = scmp.lt.s32.totalorder %s18, 2
      // Predicated region
      $region29: #{tpu_custom_call.1} parent=5 // pred_check
        %p202 = pneg %p201
      $region30: #{tpu_custom_call.1} parent=5 // pred_check_branch
        %204 = sbr.rel (%p202) target = $region32
      $region31: #{tpu_custom_call.1} parent=5 // pred_region
        // Predicated region
        $region33: #{tpu_custom_call.1} parent=31 // pred_check
          %p205 = pneg %p38
        $region34: #{tpu_custom_call.1} parent=31 // pred_check_branch
          %207 = sbr.rel (%p205) target = $region36
        $region35: #{tpu_custom_call.1} parent=31 // pred_region
          %s208 = sand.u32 %s28, 1
          %s209 = scalar_lea.sflag [#allocation4], %s208
          %s210 = sand.u32 %s28, 1
          %s211 = smul.addr %s210, 8
          %s212 = scalar_lea.vmem [#allocation3], %s211
          %s214 = ssub.s32 128, 128
          %215 = vsyncadd %s209, %s214
          %s216 = smul.addr %s18, 128
          %s217 = scalar_lea.hbm %s0, %s216
          %s219 = sshll.u32 %s212, 4
          %s220 = int_to_ptr.vmem [resolvable:$true] %s219
          %222 = dma.hbm_to_vmem [thread:$0]  %s217, 128, %s220, %s209
        $region36: #{tpu_custom_call.1} parent=31 // pred_fallthru
          _
      $region32: #{tpu_custom_call.1} parent=5 // pred_fallthru
        _
      %p223 = scmp.le.s32.totalorder 1, %s18
      %p224 = scmp.lt.s32.totalorder %s18, 3
      %p225 = pnand %p223, %p224
      %p226 = pneg %p225
      // Predicated region
      $region37: #{tpu_custom_call.1} parent=5 // pred_check
        _
      $region38: #{tpu_custom_call.1} parent=5 // pred_check_branch
        %228 = sbr.rel (%p225) target = $region40
      $region39: #{tpu_custom_call.1} parent=5 // pred_region
        %s229 = ssub.s32 %s18, 1
        %s230 = sand.u32 %s31, 1
        %s231 = scalar_lea.sflag [#allocation4], %s230
        %s232 = sand.u32 %s31, 1
        %s233 = smul.addr %s232, 8
        %s234 = scalar_lea.vmem [#allocation3], %s233
        // Predicated region
        $region41: #{tpu_custom_call.1} parent=39 // pred_check
          %p235 = pneg %p44
        $region42: #{tpu_custom_call.1} parent=39 // pred_check_branch
          %237 = sbr.rel (%p235) target = $region44
        $region43: #{tpu_custom_call.1} parent=39 // pred_region
          %238 = dma.done %s231, 128
        $region44: #{tpu_custom_call.1} parent=39 // pred_fallthru
          _
        // Predicated region
        $region45: #{tpu_custom_call.1} parent=39 // pred_check
          %p239 = pneg %p65
        $region46: #{tpu_custom_call.1} parent=39 // pred_check_branch
          %241 = sbr.rel (%p239) target = $region48
        $region47: #{tpu_custom_call.1} parent=39 // pred_region
          %242 = dma.done [#allocation7], 512
        $region48: #{tpu_custom_call.1} parent=39 // pred_fallthru
          _
        // Predicated region
        $region49: #{tpu_custom_call.1} parent=39 // pred_check
          %p243 = pneg %p107
        $region50: #{tpu_custom_call.1} parent=39 // pred_check_branch
          %245 = sbr.rel (%p243) target = $region52
        $region51: #{tpu_custom_call.1} parent=39 // pred_region
          %246 = dma.done [#allocation7], 512
        $region52: #{tpu_custom_call.1} parent=39 // pred_fallthru
          _
        %s247 = sand.u32 %s31, 1
        %s248 = scalar_lea.sflag [#allocation4], %s247
        %s249 = sand.u32 %s31, 1
        %s250 = smul.addr %s249, 8
        %s251 = scalar_lea.vmem [#allocation3], %s250
        %p252 = pneg %p44
        %p253 = pneg %p41
        %p254 = pneg %p65
        %p255 = pneg %p62
        %p256 = pneg %p86
        %p257 = pneg %p83
        %p258 = pneg %p107
        %p259 = pneg %p104
        %p260 = pneg %p128
        %p261 = pneg %p125
        %p262 = pneg %p154
        %p263 = pneg %p151
        %s264 = sand.u32 %s141, 1
        %s265 = scalar_lea.sflag [#allocation5], %s264
        %s266 = sand.u32 %s141, 1
        %s267 = smul.addr %s266, 8
        %s268 = scalar_lea.vmem [#allocation9], %s267
        %v269 = vld [vmem:[%s234] sm:$0xff]
        %v270 = vld [vmem:[#allocation6] sm:$0xff]
        %v271 = vld [vmem:[#allocation6 + $0x8] sm:$0xff]
        %v272 = vld [vmem:[#allocation6 + $0x10] sm:$0xff]
        %v273 = vld [vmem:[#allocation6 + $0x18] sm:$0xff]
        %v274 = vld [vmem:[%s2] sm:$0x1]
        %v276 = vlaneseq
        %v277 = vshrl.u32 %v276, 7
        %v278 = vsub.s32 0, %v277
        %v279 = vrot.slane %v274, %v278
        %vm281 = vcmask 261120
        %v283 = vsel %vm281, %v269, 0
        %285 = vmatprep.subr.mxu0 0.0
        %286 = vmatpush1.msra.mxu0 0.0
        %287 = vmatprep.subr.mxu0 0.0
        %288 = vmatpush1.msra.mxu0 0.0
        %289 = vmatprep.subr.mxu0 0.0
        %290 = vmatpush1.msra.mxu0 0.0
        %291 = vmatprep.subr.mxu0 0.0
        %292 = vmatpush1.msra.mxu0 0.0
        %293 = vmatprep.subr.mxu0 0.0
        %294 = vmatpush1.msra.mxu0 0.0
        %295 = vmatprep.subr.mxu0 0.0
        %296 = vmatpush1.msra.mxu0 0.0
        %297 = vmatprep.subr.mxu0 0.0
        %298 = vmatpush1.msra.mxu0 0.0
        %299 = vmatprep.subr.mxu0 0.0
        %300 = vmatpush1.msra.mxu0 0.0
        %301 = vmatprep.subr.mxu0 0.0
        %302 = vmatpush1.msra.mxu0 0.0
        %303 = vmatprep.subr.mxu0 0.0
        %304 = vmatpush1.msra.mxu0 0.0
        %305 = vmatprep.subr.mxu0 0.0
        %306 = vmatpush1.msra.mxu0 0.0
        %307 = vmatprep.subr.mxu0 0.0
        %308 = vmatpush1.msra.mxu0 0.0
        %309 = vmatprep.subr.mxu0 0.0
        %310 = vmatpush1.msra.mxu0 %v273
        %311 = vmatprep.subr.mxu0 0.0
        %312 = vmatpush1.msra.mxu0 %v272
        %313 = vmatprep.subr.mxu0 0.0
        %314 = vmatpush1.msra.mxu0 %v271
        %315 = vmatprep.subr.mxu0 0.0
        %316 = vmatpush1.msra.mxu0 %v270
        %317 = vmatprep.subr.mxu0 0.0
        %318 = vmatpush2.msra.mxu0 0.0
        %319 = vmatprep.subr.mxu0 0.0
        %320 = vmatpush2.msra.mxu0 0.0
        %321 = vmatprep.subr.mxu0 0.0
        %322 = vmatpush2.msra.mxu0 0.0
        %323 = vmatprep.subr.mxu0 0.0
        %324 = vmatpush2.msra.mxu0 0.0
        %325 = vmatprep.subr.mxu0 0.0
        %326 = vmatpush2.msra.mxu0 0.0
        %327 = vmatprep.subr.mxu0 0.0
        %328 = vmatpush2.msra.mxu0 0.0
        %329 = vmatprep.subr.mxu0 0.0
        %330 = vmatpush2.msra.mxu0 0.0
        %331 = vmatprep.subr.mxu0 0.0
        %332 = vmatpush2.msra.mxu0 0.0
        %333 = vmatprep.subr.mxu0 0.0
        %334 = vmatpush2.msra.mxu0 0.0
        %335 = vmatprep.subr.mxu0 0.0
        %336 = vmatpush2.msra.mxu0 0.0
        %337 = vmatprep.subr.mxu0 0.0
        %338 = vmatpush2.msra.mxu0 0.0
        %339 = vmatprep.subr.mxu0 0.0
        %340 = vmatpush2.msra.mxu0 0.0
        %341 = vmatprep.subr.mxu0 0.0
        %342 = vmatpush2.msra.mxu0 0.0
        %343 = vmatprep.subr.mxu0 0.0
        %344 = vmatpush2.msra.mxu0 0.0
        %345 = vmatprep.subr.mxu0 0.0
        %346 = vmatpush2.msra.mxu0 0.0
        %347 = vmatprep.subr.mxu0 0.0
        %348 = vmatpush2.msra.mxu0 0.0
        %349 = vmatprep.mubr.f32.mxu0 0.0
        %350 = vmatmul.mubr.f32.gmra.mxu0 %v283
        %v351 = vpop.f32.mrf.mxu0
        %v352 = vadd.f32 %v279, %v351
        %v353 = vpop.f32.mrf.mxu0
        %354 = vdwg.mxu0
        %v355 = vlaneseq
        %v356 = vshrl.u32 %v355, 7
        %v357 = vlaneseq
        %v358 = vand.u32 %v357, 127
        %vm359 = vcmp.le.s32.totalorder %v358, %v356
        %361 = vrot.lane.b32.xlu0 %v352, 96
        %v362 = vpop.permute.xlu0 %361
        %vm363 = vcmask 64512
        %v364 = vsel %vm363, %v352, 0
        %v366 = vsel %vm363, %v362, 0
        %368 = vmatprep.subr.mxu0 0.0
        %369 = vmatpush1.xpose.msra.mxu0 0.0
        %370 = vmatprep.subr.mxu0 0.0
        %371 = vmatpush1.xpose.msra.mxu0 0.0
        %372 = vmatprep.subr.mxu0 0.0
        %373 = vmatpush1.xpose.msra.mxu0 0.0
        %374 = vmatprep.subr.mxu0 0.0
        %375 = vmatpush1.xpose.msra.mxu0 0.0
        %376 = vmatprep.subr.mxu0 0.0
        %377 = vmatpush1.xpose.msra.mxu0 0.0
        %378 = vmatprep.subr.mxu0 0.0
        %379 = vmatpush1.xpose.msra.mxu0 0.0
        %380 = vmatprep.subr.mxu0 0.0
        %381 = vmatpush1.xpose.msra.mxu0 0.0
        %382 = vmatprep.subr.mxu0 0.0
        %383 = vmatpush1.xpose.msra.mxu0 0.0
        %384 = vmatprep.subr.mxu0 0.0
        %385 = vmatpush1.xpose.msra.mxu0 0.0
        %386 = vmatprep.subr.mxu0 0.0
        %387 = vmatpush1.xpose.msra.mxu0 0.0
        %388 = vmatprep.subr.mxu0 0.0
        %389 = vmatpush1.xpose.msra.mxu0 0.0
        %390 = vmatprep.subr.mxu0 0.0
        %391 = vmatpush1.xpose.msra.mxu0 0.0
        %392 = vmatprep.subr.mxu0 0.0
        %393 = vmatpush1.xpose.msra.mxu0 0.0
        %394 = vmatprep.subr.mxu0 0.0
        %395 = vmatpush1.xpose.msra.mxu0 0.0
        %396 = vmatprep.subr.mxu0 0.0
        %397 = vmatpush1.xpose.msra.mxu0 0.0
        %398 = vmatprep.subr.mxu0 0.0
        %399 = vmatpush1.xpose.msra.mxu0 %v366
        %400 = vmatprep.subr.mxu0 0.0
        %401 = vmatpush2.xpose.msra.mxu0 0.0
        %402 = vmatprep.subr.mxu0 0.0
        %403 = vmatpush2.xpose.msra.mxu0 0.0
        %404 = vmatprep.subr.mxu0 0.0
        %405 = vmatpush2.xpose.msra.mxu0 0.0
        %406 = vmatprep.subr.mxu0 0.0
        %407 = vmatpush2.xpose.msra.mxu0 0.0
        %408 = vmatprep.subr.mxu0 0.0
        %409 = vmatpush2.xpose.msra.mxu0 0.0
        %410 = vmatprep.subr.mxu0 0.0
        %411 = vmatpush2.xpose.msra.mxu0 0.0
        %412 = vmatprep.subr.mxu0 0.0
        %413 = vmatpush2.xpose.msra.mxu0 0.0
        %414 = vmatprep.subr.mxu0 0.0
        %415 = vmatpush2.xpose.msra.mxu0 0.0
        %416 = vmatprep.subr.mxu0 0.0
        %417 = vmatpush2.xpose.msra.mxu0 0.0
        %418 = vmatprep.subr.mxu0 0.0
        %419 = vmatpush2.xpose.msra.mxu0 0.0
        %420 = vmatprep.subr.mxu0 0.0
        %421 = vmatpush2.xpose.msra.mxu0 0.0
        %422 = vmatprep.subr.mxu0 0.0
        %423 = vmatpush2.xpose.msra.mxu0 0.0
        %424 = vmatprep.subr.mxu0 0.0
        %425 = vmatpush2.xpose.msra.mxu0 0.0
        %426 = vmatprep.subr.mxu0 0.0
        %427 = vmatpush2.xpose.msra.mxu0 0.0
        %428 = vmatprep.subr.mxu0 0.0
        %429 = vmatpush2.xpose.msra.mxu0 0.0
        %430 = vmatprep.subr.mxu0 0.0
        %431 = vmatpush2.xpose.msra.mxu0 0.0
        %432 = vmatprep.mubr.f32.mxu0 0.0
        %433 = vmatmul.mubr.f32.gmra.mxu0 %v364
        %v434 = vpop.f32.mrf.mxu0
        %v435 = vadd.f32 0.0, %v434
        %v436 = vpop.f32.mrf.mxu0
        %437 = vdwg.mxu0
        %v438 = vsel %vm359, %v435, -1e+30
        %v439 = vsel %vm363, %v438, -inf
        %440 = vmax.xlane.f32.xlu0 %v439
        %v441 = vpop.xlane.xlu0 %440
        %v442 = vsub.f32 %v438, %v441
        %v443 = vmul.f32 %v442, 1.442695
        %v444 = vpow.pop %v443
        %v445 = vsel %vm363, %v444, 0.0
        %446 = vadd.xlane.f32.xlu0 %v445
        %v447 = vpop.xlane.xlu0 %446
        %v448 = vrcp.pop %v447
        %v449 = vmul.f32 %v447, %v448
        %v450 = vsub.f32 2.0, %v449
        %v451 = vmul.f32 %v448, %v450
        %v452 = vmul.f32 %v444, %v451
        %453 = vrot.lane.b32.xlu0 %v352, 64
        %v454 = vpop.permute.xlu0 %453
        %v457 = vsel %vm363, %v452, 0
        %459 = vmatprep.subr.mxu0 0.0
        %460 = vmatpush1.msra.mxu0 0.0
        %461 = vmatprep.subr.mxu0 0.0
        %462 = vmatpush1.msra.mxu0 0.0
        %463 = vmatprep.subr.mxu0 0.0
        %464 = vmatpush1.msra.mxu0 0.0
        %465 = vmatprep.subr.mxu0 0.0
        %466 = vmatpush1.msra.mxu0 0.0
        %467 = vmatprep.subr.mxu0 0.0
        %468 = vmatpush1.msra.mxu0 0.0
        %469 = vmatprep.subr.mxu0 0.0
        %470 = vmatpush1.msra.mxu0 0.0
        %471 = vmatprep.subr.mxu0 0.0
        %472 = vmatpush1.msra.mxu0 0.0
        %473 = vmatprep.subr.mxu0 0.0
        %474 = vmatpush1.msra.mxu0 0.0
        %475 = vmatprep.subr.mxu0 0.0
        %476 = vmatpush1.msra.mxu0 0.0
        %477 = vmatprep.subr.mxu0 0.0
        %478 = vmatpush1.msra.mxu0 0.0
        %479 = vmatprep.subr.mxu0 0.0
        %480 = vmatpush1.msra.mxu0 0.0
        %481 = vmatprep.subr.mxu0 0.0
        %482 = vmatpush1.msra.mxu0 0.0
        %483 = vmatprep.subr.mxu0 0.0
        %484 = vmatpush1.msra.mxu0 0.0
        %485 = vmatprep.subr.mxu0 0.0
        %486 = vmatpush1.msra.mxu0 0.0
        %487 = vmatprep.subr.mxu0 0.0
        %488 = vmatpush1.msra.mxu0 0.0
        %489 = vmatprep.subr.mxu0 0.0
        %490 = vmatpush1.msra.mxu0 %v454
        %491 = vmatprep.subr.mxu0 0.0
        %492 = vmatpush2.msra.mxu0 0.0
        %493 = vmatprep.subr.mxu0 0.0
        %494 = vmatpush2.msra.mxu0 0.0
        %495 = vmatprep.subr.mxu0 0.0
        %496 = vmatpush2.msra.mxu0 0.0
        %497 = vmatprep.subr.mxu0 0.0
        %498 = vmatpush2.msra.mxu0 0.0
        %499 = vmatprep.subr.mxu0 0.0
        %500 = vmatpush2.msra.mxu0 0.0
        %501 = vmatprep.subr.mxu0 0.0
        %502 = vmatpush2.msra.mxu0 0.0
        %503 = vmatprep.subr.mxu0 0.0
        %504 = vmatpush2.msra.mxu0 0.0
        %505 = vmatprep.subr.mxu0 0.0
        %506 = vmatpush2.msra.mxu0 0.0
        %507 = vmatprep.subr.mxu0 0.0
        %508 = vmatpush2.msra.mxu0 0.0
        %509 = vmatprep.subr.mxu0 0.0
        %510 = vmatpush2.msra.mxu0 0.0
        %511 = vmatprep.subr.mxu0 0.0
        %512 = vmatpush2.msra.mxu0 0.0
        %513 = vmatprep.subr.mxu0 0.0
        %514 = vmatpush2.msra.mxu0 0.0
        %515 = vmatprep.subr.mxu0 0.0
        %516 = vmatpush2.msra.mxu0 0.0
        %517 = vmatprep.subr.mxu0 0.0
        %518 = vmatpush2.msra.mxu0 0.0
        %519 = vmatprep.subr.mxu0 0.0
        %520 = vmatpush2.msra.mxu0 0.0
        %521 = vmatprep.subr.mxu0 0.0
        %522 = vmatpush2.msra.mxu0 0.0
        %523 = vmatprep.mubr.f32.mxu0 0.0
        %524 = vmatmul.mubr.f32.gmra.mxu0 %v457
        %v525 = vpop.f32.mrf.mxu0
        %v526 = vadd.f32 0.0, %v525
        %v527 = vpop.f32.mrf.mxu0
        %528 = vdwg.mxu0
        %529 = vst.msk [vmem:[#allocation2] sm:$0xff] %vm363, %v526
        %530 = vrot.lane.b32.xlu0 %v352, 120
        %v531 = vpop.permute.xlu0 %530
        %532 = vrot.lane.b32.xlu0 %v352, 88
        %v533 = vpop.permute.xlu0 %532
        %v534 = vsel %vm363, %v531, 0
        %v536 = vsel %vm363, %v533, 0
        %538 = vmatprep.subr.mxu0 0.0
        %539 = vmatpush1.xpose.msra.mxu0 0.0
        %540 = vmatprep.subr.mxu0 0.0
        %541 = vmatpush1.xpose.msra.mxu0 0.0
        %542 = vmatprep.subr.mxu0 0.0
        %543 = vmatpush1.xpose.msra.mxu0 0.0
        %544 = vmatprep.subr.mxu0 0.0
        %545 = vmatpush1.xpose.msra.mxu0 0.0
        %546 = vmatprep.subr.mxu0 0.0
        %547 = vmatpush1.xpose.msra.mxu0 0.0
        %548 = vmatprep.subr.mxu0 0.0
        %549 = vmatpush1.xpose.msra.mxu0 0.0
        %550 = vmatprep.subr.mxu0 0.0
        %551 = vmatpush1.xpose.msra.mxu0 0.0
        %552 = vmatprep.subr.mxu0 0.0
        %553 = vmatpush1.xpose.msra.mxu0 0.0
        %554 = vmatprep.subr.mxu0 0.0
        %555 = vmatpush1.xpose.msra.mxu0 0.0
        %556 = vmatprep.subr.mxu0 0.0
        %557 = vmatpush1.xpose.msra.mxu0 0.0
        %558 = vmatprep.subr.mxu0 0.0
        %559 = vmatpush1.xpose.msra.mxu0 0.0
        %560 = vmatprep.subr.mxu0 0.0
        %561 = vmatpush1.xpose.msra.mxu0 0.0
        %562 = vmatprep.subr.mxu0 0.0
        %563 = vmatpush1.xpose.msra.mxu0 0.0
        %564 = vmatprep.subr.mxu0 0.0
        %565 = vmatpush1.xpose.msra.mxu0 0.0
        %566 = vmatprep.subr.mxu0 0.0
        %567 = vmatpush1.xpose.msra.mxu0 0.0
        %568 = vmatprep.subr.mxu0 0.0
        %569 = vmatpush1.xpose.msra.mxu0 %v536
        %570 = vmatprep.subr.mxu0 0.0
        %571 = vmatpush2.xpose.msra.mxu0 0.0
        %572 = vmatprep.subr.mxu0 0.0
        %573 = vmatpush2.xpose.msra.mxu0 0.0
        %574 = vmatprep.subr.mxu0 0.0
        %575 = vmatpush2.xpose.msra.mxu0 0.0
        %576 = vmatprep.subr.mxu0 0.0
        %577 = vmatpush2.xpose.msra.mxu0 0.0
        %578 = vmatprep.subr.mxu0 0.0
        %579 = vmatpush2.xpose.msra.mxu0 0.0
        %580 = vmatprep.subr.mxu0 0.0
        %581 = vmatpush2.xpose.msra.mxu0 0.0
        %582 = vmatprep.subr.mxu0 0.0
        %583 = vmatpush2.xpose.msra.mxu0 0.0
        %584 = vmatprep.subr.mxu0 0.0
        %585 = vmatpush2.xpose.msra.mxu0 0.0
        %586 = vmatprep.subr.mxu0 0.0
        %587 = vmatpush2.xpose.msra.mxu0 0.0
        %588 = vmatprep.subr.mxu0 0.0
        %589 = vmatpush2.xpose.msra.mxu0 0.0
        %590 = vmatprep.subr.mxu0 0.0
        %591 = vmatpush2.xpose.msra.mxu0 0.0
        %592 = vmatprep.subr.mxu0 0.0
        %593 = vmatpush2.xpose.msra.mxu0 0.0
        %594 = vmatprep.subr.mxu0 0.0
        %595 = vmatpush2.xpose.msra.mxu0 0.0
        %596 = vmatprep.subr.mxu0 0.0
        %597 = vmatpush2.xpose.msra.mxu0 0.0
        %598 = vmatprep.subr.mxu0 0.0
        %599 = vmatpush2.xpose.msra.mxu0 0.0
        %600 = vmatprep.subr.mxu0 0.0
        %601 = vmatpush2.xpose.msra.mxu0 0.0
        %602 = vmatprep.mubr.f32.mxu0 0.0
        %603 = vmatmul.mubr.f32.gmra.mxu0 %v534
        %v604 = vpop.f32.mrf.mxu0
        %v605 = vadd.f32 0.0, %v604
        %v606 = vpop.f32.mrf.mxu0
        %607 = vdwg.mxu0
        %v608 = vsel %vm359, %v605, -1e+30
        %v609 = vsel %vm363, %v608, -inf
        %610 = vmax.xlane.f32.xlu0 %v609
        %v611 = vpop.xlane.xlu0 %610
        %v612 = vsub.f32 %v608, %v611
        %v613 = vmul.f32 %v612, 1.442695
        %v614 = vpow.pop %v613
        %v615 = vsel %vm363, %v614, 0.0
        %616 = vadd.xlane.f32.xlu0 %v615
        %v617 = vpop.xlane.xlu0 %616
        %v618 = vrcp.pop %v617
        %v619 = vmul.f32 %v617, %v618
        %v620 = vsub.f32 2.0, %v619
        %v621 = vmul.f32 %v618, %v620
        %v622 = vmul.f32 %v614, %v621
        %623 = vrot.lane.b32.xlu0 %v352, 56
        %v624 = vpop.permute.xlu0 %623
        %v627 = vsel %vm363, %v622, 0
        %629 = vmatprep.subr.mxu0 0.0
        %630 = vmatpush1.msra.mxu0 0.0
        %631 = vmatprep.subr.mxu0 0.0
        %632 = vmatpush1.msra.mxu0 0.0
        %633 = vmatprep.subr.mxu0 0.0
        %634 = vmatpush1.msra.mxu0 0.0
        %635 = vmatprep.subr.mxu0 0.0
        %636 = vmatpush1.msra.mxu0 0.0
        %637 = vmatprep.subr.mxu0 0.0
        %638 = vmatpush1.msra.mxu0 0.0
        %639 = vmatprep.subr.mxu0 0.0
        %640 = vmatpush1.msra.mxu0 0.0
        %641 = vmatprep.subr.mxu0 0.0
        %642 = vmatpush1.msra.mxu0 0.0
        %643 = vmatprep.subr.mxu0 0.0
        %644 = vmatpush1.msra.mxu0 0.0
        %645 = vmatprep.subr.mxu0 0.0
        %646 = vmatpush1.msra.mxu0 0.0
        %647 = vmatprep.subr.mxu0 0.0
        %648 = vmatpush1.msra.mxu0 0.0
        %649 = vmatprep.subr.mxu0 0.0
        %650 = vmatpush1.msra.mxu0 0.0
        %651 = vmatprep.subr.mxu0 0.0
        %652 = vmatpush1.msra.mxu0 0.0
        %653 = vmatprep.subr.mxu0 0.0
        %654 = vmatpush1.msra.mxu0 0.0
        %655 = vmatprep.subr.mxu0 0.0
        %656 = vmatpush1.msra.mxu0 0.0
        %657 = vmatprep.subr.mxu0 0.0
        %658 = vmatpush1.msra.mxu0 0.0
        %659 = vmatprep.subr.mxu0 0.0
        %660 = vmatpush1.msra.mxu0 %v624
        %661 = vmatprep.subr.mxu0 0.0
        %662 = vmatpush2.msra.mxu0 0.0
        %663 = vmatprep.subr.mxu0 0.0
        %664 = vmatpush2.msra.mxu0 0.0
        %665 = vmatprep.subr.mxu0 0.0
        %666 = vmatpush2.msra.mxu0 0.0
        %667 = vmatprep.subr.mxu0 0.0
        %668 = vmatpush2.msra.mxu0 0.0
        %669 = vmatprep.subr.mxu0 0.0
        %670 = vmatpush2.msra.mxu0 0.0
        %671 = vmatprep.subr.mxu0 0.0
        %672 = vmatpush2.msra.mxu0 0.0
        %673 = vmatprep.subr.mxu0 0.0
        %674 = vmatpush2.msra.mxu0 0.0
        %675 = vmatprep.subr.mxu0 0.0
        %676 = vmatpush2.msra.mxu0 0.0
        %677 = vmatprep.subr.mxu0 0.0
        %678 = vmatpush2.msra.mxu0 0.0
        %679 = vmatprep.subr.mxu0 0.0
        %680 = vmatpush2.msra.mxu0 0.0
        %681 = vmatprep.subr.mxu0 0.0
        %682 = vmatpush2.msra.mxu0 0.0
        %683 = vmatprep.subr.mxu0 0.0
        %684 = vmatpush2.msra.mxu0 0.0
        %685 = vmatprep.subr.mxu0 0.0
        %686 = vmatpush2.msra.mxu0 0.0
        %687 = vmatprep.subr.mxu0 0.0
        %688 = vmatpush2.msra.mxu0 0.0
        %689 = vmatprep.subr.mxu0 0.0
        %690 = vmatpush2.msra.mxu0 0.0
        %691 = vmatprep.subr.mxu0 0.0
        %692 = vmatpush2.msra.mxu0 0.0
        %693 = vmatprep.mubr.f32.mxu0 0.0
        %694 = vmatmul.mubr.f32.gmra.mxu0 %v627
        %v695 = vpop.f32.mrf.mxu0
        %v696 = vadd.f32 0.0, %v695
        %v697 = vpop.f32.mrf.mxu0
        %698 = vdwg.mxu0
        %700 = vrot.lane.b32.xlu0 %v696, 8
        %v701 = vpop.permute.xlu0 %700
        %vm703 = vcmask 130112
        %704 = vst.msk [vmem:[#allocation2] sm:$0xff] %vm703, %v701
        %705 = vrot.lane.b32.xlu0 %v352, 112
        %v706 = vpop.permute.xlu0 %705
        %707 = vrot.lane.b32.xlu0 %v352, 80
        %v708 = vpop.permute.xlu0 %707
        %v709 = vsel %vm363, %v706, 0
        %v711 = vsel %vm363, %v708, 0
        %713 = vmatprep.subr.mxu0 0.0
        %714 = vmatpush1.xpose.msra.mxu0 0.0
        %715 = vmatprep.subr.mxu0 0.0
        %716 = vmatpush1.xpose.msra.mxu0 0.0
        %717 = vmatprep.subr.mxu0 0.0
        %718 = vmatpush1.xpose.msra.mxu0 0.0
        %719 = vmatprep.subr.mxu0 0.0
        %720 = vmatpush1.xpose.msra.mxu0 0.0
        %721 = vmatprep.subr.mxu0 0.0
        %722 = vmatpush1.xpose.msra.mxu0 0.0
        %723 = vmatprep.subr.mxu0 0.0
        %724 = vmatpush1.xpose.msra.mxu0 0.0
        %725 = vmatprep.subr.mxu0 0.0
        %726 = vmatpush1.xpose.msra.mxu0 0.0
        %727 = vmatprep.subr.mxu0 0.0
        %728 = vmatpush1.xpose.msra.mxu0 0.0
        %729 = vmatprep.subr.mxu0 0.0
        %730 = vmatpush1.xpose.msra.mxu0 0.0
        %731 = vmatprep.subr.mxu0 0.0
        %732 = vmatpush1.xpose.msra.mxu0 0.0
        %733 = vmatprep.subr.mxu0 0.0
        %734 = vmatpush1.xpose.msra.mxu0 0.0
        %735 = vmatprep.subr.mxu0 0.0
        %736 = vmatpush1.xpose.msra.mxu0 0.0
        %737 = vmatprep.subr.mxu0 0.0
        %738 = vmatpush1.xpose.msra.mxu0 0.0
        %739 = vmatprep.subr.mxu0 0.0
        %740 = vmatpush1.xpose.msra.mxu0 0.0
        %741 = vmatprep.subr.mxu0 0.0
        %742 = vmatpush1.xpose.msra.mxu0 0.0
        %743 = vmatprep.subr.mxu0 0.0
        %744 = vmatpush1.xpose.msra.mxu0 %v711
        %745 = vmatprep.subr.mxu0 0.0
        %746 = vmatpush2.xpose.msra.mxu0 0.0
        %747 = vmatprep.subr.mxu0 0.0
        %748 = vmatpush2.xpose.msra.mxu0 0.0
        %749 = vmatprep.subr.mxu0 0.0
        %750 = vmatpush2.xpose.msra.mxu0 0.0
        %751 = vmatprep.subr.mxu0 0.0
        %752 = vmatpush2.xpose.msra.mxu0 0.0
        %753 = vmatprep.subr.mxu0 0.0
        %754 = vmatpush2.xpose.msra.mxu0 0.0
        %755 = vmatprep.subr.mxu0 0.0
        %756 = vmatpush2.xpose.msra.mxu0 0.0
        %757 = vmatprep.subr.mxu0 0.0
        %758 = vmatpush2.xpose.msra.mxu0 0.0
        %759 = vmatprep.subr.mxu0 0.0
        %760 = vmatpush2.xpose.msra.mxu0 0.0
        %761 = vmatprep.subr.mxu0 0.0
        %762 = vmatpush2.xpose.msra.mxu0 0.0
        %763 = vmatprep.subr.mxu0 0.0
        %764 = vmatpush2.xpose.msra.mxu0 0.0
        %765 = vmatprep.subr.mxu0 0.0
        %766 = vmatpush2.xpose.msra.mxu0 0.0
        %767 = vmatprep.subr.mxu0 0.0
        %768 = vmatpush2.xpose.msra.mxu0 0.0
        %769 = vmatprep.subr.mxu0 0.0
        %770 = vmatpush2.xpose.msra.mxu0 0.0
        %771 = vmatprep.subr.mxu0 0.0
        %772 = vmatpush2.xpose.msra.mxu0 0.0
        %773 = vmatprep.subr.mxu0 0.0
        %774 = vmatpush2.xpose.msra.mxu0 0.0
        %775 = vmatprep.subr.mxu0 0.0
        %776 = vmatpush2.xpose.msra.mxu0 0.0
        %777 = vmatprep.mubr.f32.mxu0 0.0
        %778 = vmatmul.mubr.f32.gmra.mxu0 %v709
        %v779 = vpop.f32.mrf.mxu0
        %v780 = vadd.f32 0.0, %v779
        %v781 = vpop.f32.mrf.mxu0
        %782 = vdwg.mxu0
        %v783 = vsel %vm359, %v780, -1e+30
        %v784 = vsel %vm363, %v783, -inf
        %785 = vmax.xlane.f32.xlu0 %v784
        %v786 = vpop.xlane.xlu0 %785
        %v787 = vsub.f32 %v783, %v786
        %v788 = vmul.f32 %v787, 1.442695
        %v789 = vpow.pop %v788
        %v790 = vsel %vm363, %v789, 0.0
        %791 = vadd.xlane.f32.xlu0 %v790
        %v792 = vpop.xlane.xlu0 %791
        %v793 = vrcp.pop %v792
        %v794 = vmul.f32 %v792, %v793
        %v795 = vsub.f32 2.0, %v794
        %v796 = vmul.f32 %v793, %v795
        %v797 = vmul.f32 %v789, %v796
        %798 = vrot.lane.b32.xlu0 %v352, 48
        %v799 = vpop.permute.xlu0 %798
        %v802 = vsel %vm363, %v797, 0
        %804 = vmatprep.subr.mxu0 0.0
        %805 = vmatpush1.msra.mxu0 0.0
        %806 = vmatprep.subr.mxu0 0.0
        %807 = vmatpush1.msra.mxu0 0.0
        %808 = vmatprep.subr.mxu0 0.0
        %809 = vmatpush1.msra.mxu0 0.0
        %810 = vmatprep.subr.mxu0 0.0
        %811 = vmatpush1.msra.mxu0 0.0
        %812 = vmatprep.subr.mxu0 0.0
        %813 = vmatpush1.msra.mxu0 0.0
        %814 = vmatprep.subr.mxu0 0.0
        %815 = vmatpush1.msra.mxu0 0.0
        %816 = vmatprep.subr.mxu0 0.0
        %817 = vmatpush1.msra.mxu0 0.0
        %818 = vmatprep.subr.mxu0 0.0
        %819 = vmatpush1.msra.mxu0 0.0
        %820 = vmatprep.subr.mxu0 0.0
        %821 = vmatpush1.msra.mxu0 0.0
        %822 = vmatprep.subr.mxu0 0.0
        %823 = vmatpush1.msra.mxu0 0.0
        %824 = vmatprep.subr.mxu0 0.0
        %825 = vmatpush1.msra.mxu0 0.0
        %826 = vmatprep.subr.mxu0 0.0
        %827 = vmatpush1.msra.mxu0 0.0
        %828 = vmatprep.subr.mxu0 0.0
        %829 = vmatpush1.msra.mxu0 0.0
        %830 = vmatprep.subr.mxu0 0.0
        %831 = vmatpush1.msra.mxu0 0.0
        %832 = vmatprep.subr.mxu0 0.0
        %833 = vmatpush1.msra.mxu0 0.0
        %834 = vmatprep.subr.mxu0 0.0
        %835 = vmatpush1.msra.mxu0 %v799
        %836 = vmatprep.subr.mxu0 0.0
        %837 = vmatpush2.msra.mxu0 0.0
        %838 = vmatprep.subr.mxu0 0.0
        %839 = vmatpush2.msra.mxu0 0.0
        %840 = vmatprep.subr.mxu0 0.0
        %841 = vmatpush2.msra.mxu0 0.0
        %842 = vmatprep.subr.mxu0 0.0
        %843 = vmatpush2.msra.mxu0 0.0
        %844 = vmatprep.subr.mxu0 0.0
        %845 = vmatpush2.msra.mxu0 0.0
        %846 = vmatprep.subr.mxu0 0.0
        %847 = vmatpush2.msra.mxu0 0.0
        %848 = vmatprep.subr.mxu0 0.0
        %849 = vmatpush2.msra.mxu0 0.0
        %850 = vmatprep.subr.mxu0 0.0
        %851 = vmatpush2.msra.mxu0 0.0
        %852 = vmatprep.subr.mxu0 0.0
        %853 = vmatpush2.msra.mxu0 0.0
        %854 = vmatprep.subr.mxu0 0.0
        %855 = vmatpush2.msra.mxu0 0.0
        %856 = vmatprep.subr.mxu0 0.0
        %857 = vmatpush2.msra.mxu0 0.0
        %858 = vmatprep.subr.mxu0 0.0
        %859 = vmatpush2.msra.mxu0 0.0
        %860 = vmatprep.subr.mxu0 0.0
        %861 = vmatpush2.msra.mxu0 0.0
        %862 = vmatprep.subr.mxu0 0.0
        %863 = vmatpush2.msra.mxu0 0.0
        %864 = vmatprep.subr.mxu0 0.0
        %865 = vmatpush2.msra.mxu0 0.0
        %866 = vmatprep.subr.mxu0 0.0
        %867 = vmatpush2.msra.mxu0 0.0
        %868 = vmatprep.mubr.f32.mxu0 0.0
        %869 = vmatmul.mubr.f32.gmra.mxu0 %v802
        %v870 = vpop.f32.mrf.mxu0
        %v871 = vadd.f32 0.0, %v870
        %v872 = vpop.f32.mrf.mxu0
        %873 = vdwg.mxu0
        %875 = vrot.lane.b32.xlu0 %v871, 16
        %v876 = vpop.permute.xlu0 %875
        %vm878 = vcmask 195712
        %879 = vst.msk [vmem:[#allocation2] sm:$0xff] %vm878, %v876
        %880 = vrot.lane.b32.xlu0 %v352, 104
        %v881 = vpop.permute.xlu0 %880
        %882 = vrot.lane.b32.xlu0 %v352, 72
        %v883 = vpop.permute.xlu0 %882
        %v884 = vsel %vm363, %v881, 0
        %v886 = vsel %vm363, %v883, 0
        %888 = vmatprep.subr.mxu0 0.0
        %889 = vmatpush1.xpose.msra.mxu0 0.0
        %890 = vmatprep.subr.mxu0 0.0
        %891 = vmatpush1.xpose.msra.mxu0 0.0
        %892 = vmatprep.subr.mxu0 0.0
        %893 = vmatpush1.xpose.msra.mxu0 0.0
        %894 = vmatprep.subr.mxu0 0.0
        %895 = vmatpush1.xpose.msra.mxu0 0.0
        %896 = vmatprep.subr.mxu0 0.0
        %897 = vmatpush1.xpose.msra.mxu0 0.0
        %898 = vmatprep.subr.mxu0 0.0
        %899 = vmatpush1.xpose.msra.mxu0 0.0
        %900 = vmatprep.subr.mxu0 0.0
        %901 = vmatpush1.xpose.msra.mxu0 0.0
        %902 = vmatprep.subr.mxu0 0.0
        %903 = vmatpush1.xpose.msra.mxu0 0.0
        %904 = vmatprep.subr.mxu0 0.0
        %905 = vmatpush1.xpose.msra.mxu0 0.0
        %906 = vmatprep.subr.mxu0 0.0
        %907 = vmatpush1.xpose.msra.mxu0 0.0
        %908 = vmatprep.subr.mxu0 0.0
        %909 = vmatpush1.xpose.msra.mxu0 0.0
        %910 = vmatprep.subr.mxu0 0.0
        %911 = vmatpush1.xpose.msra.mxu0 0.0
        %912 = vmatprep.subr.mxu0 0.0
        %913 = vmatpush1.xpose.msra.mxu0 0.0
        %914 = vmatprep.subr.mxu0 0.0
        %915 = vmatpush1.xpose.msra.mxu0 0.0
        %916 = vmatprep.subr.mxu0 0.0
        %917 = vmatpush1.xpose.msra.mxu0 0.0
        %918 = vmatprep.subr.mxu0 0.0
        %919 = vmatpush1.xpose.msra.mxu0 %v886
        %920 = vmatprep.subr.mxu0 0.0
        %921 = vmatpush2.xpose.msra.mxu0 0.0
        %922 = vmatprep.subr.mxu0 0.0
        %923 = vmatpush2.xpose.msra.mxu0 0.0
        %924 = vmatprep.subr.mxu0 0.0
        %925 = vmatpush2.xpose.msra.mxu0 0.0
        %926 = vmatprep.subr.mxu0 0.0
        %927 = vmatpush2.xpose.msra.mxu0 0.0
        %928 = vmatprep.subr.mxu0 0.0
        %929 = vmatpush2.xpose.msra.mxu0 0.0
        %930 = vmatprep.subr.mxu0 0.0
        %931 = vmatpush2.xpose.msra.mxu0 0.0
        %932 = vmatprep.subr.mxu0 0.0
        %933 = vmatpush2.xpose.msra.mxu0 0.0
        %934 = vmatprep.subr.mxu0 0.0
        %935 = vmatpush2.xpose.msra.mxu0 0.0
        %936 = vmatprep.subr.mxu0 0.0
        %937 = vmatpush2.xpose.msra.mxu0 0.0
        %938 = vmatprep.subr.mxu0 0.0
        %939 = vmatpush2.xpose.msra.mxu0 0.0
        %940 = vmatprep.subr.mxu0 0.0
        %941 = vmatpush2.xpose.msra.mxu0 0.0
        %942 = vmatprep.subr.mxu0 0.0
        %943 = vmatpush2.xpose.msra.mxu0 0.0
        %944 = vmatprep.subr.mxu0 0.0
        %945 = vmatpush2.xpose.msra.mxu0 0.0
        %946 = vmatprep.subr.mxu0 0.0
        %947 = vmatpush2.xpose.msra.mxu0 0.0
        %948 = vmatprep.subr.mxu0 0.0
        %949 = vmatpush2.xpose.msra.mxu0 0.0
        %950 = vmatprep.subr.mxu0 0.0
        %951 = vmatpush2.xpose.msra.mxu0 0.0
        %952 = vmatprep.mubr.f32.mxu0 0.0
        %953 = vmatmul.mubr.f32.gmra.mxu0 %v884
        %v954 = vpop.f32.mrf.mxu0
        %v955 = vadd.f32 0.0, %v954
        %v956 = vpop.f32.mrf.mxu0
        %957 = vdwg.mxu0
        %v958 = vsel %vm359, %v955, -1e+30
        %v959 = vsel %vm363, %v958, -inf
        %960 = vmax.xlane.f32.xlu0 %v959
        %v961 = vpop.xlane.xlu0 %960
        %v962 = vsub.f32 %v958, %v961
        %v963 = vmul.f32 %v962, 1.442695
        %v964 = vpow.pop %v963
        %v965 = vsel %vm363, %v964, 0.0
        %966 = vadd.xlane.f32.xlu0 %v965
        %v967 = vpop.xlane.xlu0 %966
        %v968 = vrcp.pop %v967
        %v969 = vmul.f32 %v967, %v968
        %v970 = vsub.f32 2.0, %v969
        %v971 = vmul.f32 %v968, %v970
        %v972 = vmul.f32 %v964, %v971
        %973 = vrot.lane.b32.xlu0 %v352, 40
        %v974 = vpop.permute.xlu0 %973
        %v977 = vsel %vm363, %v972, 0
        %979 = vmatprep.subr.mxu0 0.0
        %980 = vmatpush1.msra.mxu0 0.0
        %981 = vmatprep.subr.mxu0 0.0
        %982 = vmatpush1.msra.mxu0 0.0
        %983 = vmatprep.subr.mxu0 0.0
        %984 = vmatpush1.msra.mxu0 0.0
        %985 = vmatprep.subr.mxu0 0.0
        %986 = vmatpush1.msra.mxu0 0.0
        %987 = vmatprep.subr.mxu0 0.0
        %988 = vmatpush1.msra.mxu0 0.0
        %989 = vmatprep.subr.mxu0 0.0
        %990 = vmatpush1.msra.mxu0 0.0
        %991 = vmatprep.subr.mxu0 0.0
        %992 = vmatpush1.msra.mxu0 0.0
        %993 = vmatprep.subr.mxu0 0.0
        %994 = vmatpush1.msra.mxu0 0.0
        %995 = vmatprep.subr.mxu0 0.0
        %996 = vmatpush1.msra.mxu0 0.0
        %997 = vmatprep.subr.mxu0 0.0
        %998 = vmatpush1.msra.mxu0 0.0
        %999 = vmatprep.subr.mxu0 0.0
        %1000 = vmatpush1.msra.mxu0 0.0
        %1001 = vmatprep.subr.mxu0 0.0
        %1002 = vmatpush1.msra.mxu0 0.0
        %1003 = vmatprep.subr.mxu0 0.0
        %1004 = vmatpush1.msra.mxu0 0.0
        %1005 = vmatprep.subr.mxu0 0.0
        %1006 = vmatpush1.msra.mxu0 0.0
        %1007 = vmatprep.subr.mxu0 0.0
        %1008 = vmatpush1.msra.mxu0 0.0
        %1009 = vmatprep.subr.mxu0 0.0
        %1010 = vmatpush1.msra.mxu0 %v974
        %1011 = vmatprep.subr.mxu0 0.0
        %1012 = vmatpush2.msra.mxu0 0.0
        %1013 = vmatprep.subr.mxu0 0.0
        %1014 = vmatpush2.msra.mxu0 0.0
        %1015 = vmatprep.subr.mxu0 0.0
        %1016 = vmatpush2.msra.mxu0 0.0
        %1017 = vmatprep.subr.mxu0 0.0
        %1018 = vmatpush2.msra.mxu0 0.0
        %1019 = vmatprep.subr.mxu0 0.0
        %1020 = vmatpush2.msra.mxu0 0.0
        %1021 = vmatprep.subr.mxu0 0.0
        %1022 = vmatpush2.msra.mxu0 0.0
        %1023 = vmatprep.subr.mxu0 0.0
        %1024 = vmatpush2.msra.mxu0 0.0
        %1025 = vmatprep.subr.mxu0 0.0
        %1026 = vmatpush2.msra.mxu0 0.0
        %1027 = vmatprep.subr.mxu0 0.0
        %1028 = vmatpush2.msra.mxu0 0.0
        %1029 = vmatprep.subr.mxu0 0.0
        %1030 = vmatpush2.msra.mxu0 0.0
        %1031 = vmatprep.subr.mxu0 0.0
        %1032 = vmatpush2.msra.mxu0 0.0
        %1033 = vmatprep.subr.mxu0 0.0
        %1034 = vmatpush2.msra.mxu0 0.0
        %1035 = vmatprep.subr.mxu0 0.0
        %1036 = vmatpush2.msra.mxu0 0.0
        %1037 = vmatprep.subr.mxu0 0.0
        %1038 = vmatpush2.msra.mxu0 0.0
        %1039 = vmatprep.subr.mxu0 0.0
        %1040 = vmatpush2.msra.mxu0 0.0
        %1041 = vmatprep.subr.mxu0 0.0
        %1042 = vmatpush2.msra.mxu0 0.0
        %1043 = vmatprep.mubr.f32.mxu0 0.0
        %1044 = vmatmul.mubr.f32.gmra.mxu0 %v977
        %v1045 = vpop.f32.mrf.mxu0
        %v1046 = vadd.f32 0.0, %v1045
        %v1047 = vpop.f32.mrf.mxu0
        %1048 = vdwg.mxu0
        %1050 = vrot.lane.b32.xlu0 %v1046, 24
        %v1051 = vpop.permute.xlu0 %1050
        %vm1053 = vcmask 261312
        %1054 = vst.msk [vmem:[#allocation2] sm:$0xff] %vm1053, %v1051
        %v1055 = vld [vmem:[#allocation2] sm:$0xff]
        %v1056 = vld [vmem:[#allocation8] sm:$0xff]
        %v1057 = vld [vmem:[#allocation8 + $0x8] sm:$0xff]
        %v1058 = vld [vmem:[#allocation8 + $0x10] sm:$0xff]
        %v1059 = vld [vmem:[#allocation8 + $0x18] sm:$0xff]
        %v1060 = vld [vmem:[%s4] sm:$0x1]
        %v1062 = vlaneseq
        %v1063 = vshrl.u32 %v1062, 7
        %v1064 = vsub.s32 0, %v1063
        %v1065 = vrot.slane %v1060, %v1064
        %v1068 = vsel %vm281, %v1055, 0
        %1070 = vmatprep.subr.mxu0 0.0
        %1071 = vmatpush1.msra.mxu0 0.0
        %1072 = vmatprep.subr.mxu0 0.0
        %1073 = vmatpush1.msra.mxu0 0.0
        %1074 = vmatprep.subr.mxu0 0.0
        %1075 = vmatpush1.msra.mxu0 0.0
        %1076 = vmatprep.subr.mxu0 0.0
        %1077 = vmatpush1.msra.mxu0 0.0
        %1078 = vmatprep.subr.mxu0 0.0
        %1079 = vmatpush1.msra.mxu0 0.0
        %1080 = vmatprep.subr.mxu0 0.0
        %1081 = vmatpush1.msra.mxu0 0.0
        %1082 = vmatprep.subr.mxu0 0.0
        %1083 = vmatpush1.msra.mxu0 0.0
        %1084 = vmatprep.subr.mxu0 0.0
        %1085 = vmatpush1.msra.mxu0 0.0
        %1086 = vmatprep.subr.mxu0 0.0
        %1087 = vmatpush1.msra.mxu0 0.0
        %1088 = vmatprep.subr.mxu0 0.0
        %1089 = vmatpush1.msra.mxu0 0.0
        %1090 = vmatprep.subr.mxu0 0.0
        %1091 = vmatpush1.msra.mxu0 0.0
        %1092 = vmatprep.subr.mxu0 0.0
        %1093 = vmatpush1.msra.mxu0 0.0
        %1094 = vmatprep.subr.mxu0 0.0
        %1095 = vmatpush1.msra.mxu0 %v1059
        %1096 = vmatprep.subr.mxu0 0.0
        %1097 = vmatpush1.msra.mxu0 %v1058
        %1098 = vmatprep.subr.mxu0 0.0
        %1099 = vmatpush1.msra.mxu0 %v1057
        %1100 = vmatprep.subr.mxu0 0.0
        %1101 = vmatpush1.msra.mxu0 %v1056
        %1102 = vmatprep.subr.mxu0 0.0
        %1103 = vmatpush2.msra.mxu0 0.0
        %1104 = vmatprep.subr.mxu0 0.0
        %1105 = vmatpush2.msra.mxu0 0.0
        %1106 = vmatprep.subr.mxu0 0.0
        %1107 = vmatpush2.msra.mxu0 0.0
        %1108 = vmatprep.subr.mxu0 0.0
        %1109 = vmatpush2.msra.mxu0 0.0
        %1110 = vmatprep.subr.mxu0 0.0
        %1111 = vmatpush2.msra.mxu0 0.0
        %1112 = vmatprep.subr.mxu0 0.0
        %1113 = vmatpush2.msra.mxu0 0.0
        %1114 = vmatprep.subr.mxu0 0.0
        %1115 = vmatpush2.msra.mxu0 0.0
        %1116 = vmatprep.subr.mxu0 0.0
        %1117 = vmatpush2.msra.mxu0 0.0
        %1118 = vmatprep.subr.mxu0 0.0
        %1119 = vmatpush2.msra.mxu0 0.0
        %1120 = vmatprep.subr.mxu0 0.0
        %1121 = vmatpush2.msra.mxu0 0.0
        %1122 = vmatprep.subr.mxu0 0.0
        %1123 = vmatpush2.msra.mxu0 0.0
        %1124 = vmatprep.subr.mxu0 0.0
        %1125 = vmatpush2.msra.mxu0 0.0
        %1126 = vmatprep.subr.mxu0 0.0
        %1127 = vmatpush2.msra.mxu0 0.0
        %1128 = vmatprep.subr.mxu0 0.0
        %1129 = vmatpush2.msra.mxu0 0.0
        %1130 = vmatprep.subr.mxu0 0.0
        %1131 = vmatpush2.msra.mxu0 0.0
        %1132 = vmatprep.subr.mxu0 0.0
        %1133 = vmatpush2.msra.mxu0 0.0
        %1134 = vmatprep.mubr.f32.mxu0 0.0
        %1135 = vmatmul.mubr.f32.gmra.mxu0 %v1068
        %v1136 = vpop.f32.mrf.mxu0
        %v1137 = vadd.f32 %v1065, %v1136
        %v1138 = vpop.f32.mrf.mxu0
        %1139 = vdwg.mxu0
        %1140 = vst.msk [vmem:[%s268] sm:$0xff] %vm281, %v1137
        %s1141 = sand.u32 %s141, 1
        %s1142 = scalar_lea.sflag [#allocation5], %s1141
        %s1143 = sand.u32 %s141, 1
        %s1144 = smul.addr %s1143, 8
        %s1145 = scalar_lea.vmem [#allocation9], %s1144
        // Predicated region
        $region53: #{tpu_custom_call.1} parent=39 // pred_check
          %p1146 = pneg %p151
        $region54: #{tpu_custom_call.1} parent=39 // pred_check_branch
          %1148 = sbr.rel (%p1146) target = $region56
        $region55: #{tpu_custom_call.1} parent=39 // pred_region
          %s1150 = ssub.s32 128, 128
          %1151 = vsyncadd %s1142, %s1150
          %s1152 = smul.addr %s23, 128
          %s1153 = scalar_lea.hbm %s5, %s1152
          %s1155 = sshll.u32 %s1145, 4
          %s1156 = int_to_ptr.vmem [resolvable:$true] %s1155
          %1158 = dma.vmem_to_hbm [thread:$0]  %s1156, 128, %s1153, %s1142
        $region56: #{tpu_custom_call.1} parent=39 // pred_fallthru
          _
      $region40: #{tpu_custom_call.1} parent=5 // pred_fallthru
        _
      %p1159 = scmp.le.s32.totalorder 2, %s18
      // Predicated region
      $region57: #{tpu_custom_call.1} parent=5 // pred_check
        %p1160 = pneg %p1159
      $region58: #{tpu_custom_call.1} parent=5 // pred_check_branch
        %1162 = sbr.rel (%p1160) target = $region60
      $region59: #{tpu_custom_call.1} parent=5 // pred_region
        %s1163 = ssub.s32 %s18, 2
        // Predicated region
        $region61: #{tpu_custom_call.1} parent=59 // pred_check
          %p1164 = pneg %p157
        $region62: #{tpu_custom_call.1} parent=59 // pred_check_branch
          %1166 = sbr.rel (%p1164) target = $region64
        $region63: #{tpu_custom_call.1} parent=59 // pred_region
          %s1167 = sand.u32 %s142, 1
          %s1168 = scalar_lea.sflag [#allocation5], %s1167
          %s1169 = sand.u32 %s142, 1
          %s1170 = smul.addr %s1169, 8
          %s1171 = scalar_lea.vmem [#allocation9], %s1170
          %1172 = dma.done %s1168, 128
        $region64: #{tpu_custom_call.1} parent=59 // pred_fallthru
          _
      $region60: #{tpu_custom_call.1} parent=5 // pred_fallthru
        _
    $region6: #{tpu_custom_call.1} parent=1 // loop_footer
      %s22 = sadd.s32 1, %s18
    $region7: #{tpu_custom_call.1} parent=1 // loop_footer_branch
      %17 = sbr.rel target = $region3
    $region8: #{tpu_custom_call.1} parent=1 // loop_exit
      _
    %1173 = vsyncpa [#allocation4], 1
    %s1174 = scalar_lea.sflag [#allocation4], 1
    %1175 = vsyncpa %s1174, 1
    %1176 = vsyncpa [#allocation7], 1
    %1177 = vsyncpa [#allocation5], 1
    %s1178 = scalar_lea.sflag [#allocation5], 1
    %1179 = vsyncpa %s1178, 1

</llo_original>
